<compile_context>
chip_gen: v7x
topology: tpu7x:2x2x1
jax: 0.10.0
libtpu: 0.0.40
codegen_flags: <defaults>
</compile_context>

<pallas_src>
import functools

import jax
import jax.numpy as jnp
from jax.experimental import pallas as pl
from jax.experimental.pallas import tpu as pltpu


_INV_SQRT2 = 0.7071067811865476
_LN_EPS = 1e-5
_VMEM_LIMIT = 64 * 1024 * 1024


def _round_up(x, n):
    return (x + n - 1) // n * n


def _gelu_exact(x):
    # Matches torch.nn.GELU() default (erf-based).
    return 0.5 * x * (1.0 + jax.lax.erf(x * jnp.float32(_INV_SQRT2)))


# --------------------------------------------------------------------------------
# Kernel 1: y = x @ W + b   (patch-embedding projection, classifier)
# --------------------------------------------------------------------------------
def _linear_kernel(x_ref, w_ref, b_ref, o_ref):
    y = jnp.dot(x_ref[...], w_ref[...], preferred_element_type=jnp.float32)
    y = y + b_ref[...].astype(jnp.float32)
    o_ref[...] = y.astype(o_ref.dtype)


def linear(x2d, w, b, *, tm=256):
    m, d = x2d.shape
    dout = w.shape[1]
    dp = _round_up(d, 128)
    op = _round_up(dout, 128)
    tm_eff = min(tm, _round_up(m, 8))
    mp = _round_up(m, tm_eff)

    x_p = jnp.pad(x2d, ((0, mp - m), (0, dp - d)))
    w_p = jnp.pad(w, ((0, dp - d), (0, op - dout)))
    b_p = jnp.pad(b, (0, op - dout)).reshape(1, op)

    out = pl.pallas_call(
        _linear_kernel,
        out_shape=jax.ShapeDtypeStruct((mp, op), x2d.dtype),
        grid_spec=pltpu.PrefetchScalarGridSpec(
            num_scalar_prefetch=0,
            grid=(mp // tm_eff,),
            in_specs=[
                pl.BlockSpec((tm_eff, dp), lambda i: (i, 0)),   # x row tile
                pl.BlockSpec((dp, op), lambda i: (0, 0)),       # W (resident)
                pl.BlockSpec((1, op), lambda i: (0, 0)),        # b
            ],
            out_specs=pl.BlockSpec((tm_eff, op), lambda i: (i, 0)),
        ),
        compiler_params=pltpu.CompilerParams(
            dimension_semantics=("parallel",),
            vmem_limit_bytes=_VMEM_LIMIT,
        ),
    )(x_p, w_p, b_p)
    return out[:m, :dout]


# --------------------------------------------------------------------------------
# Kernel 2: channel mixing  out = x + MLP(LN(x)),   row-tiled over (B*P, C)
# --------------------------------------------------------------------------------
def _channel_mix_kernel(x_ref, g_ref, be_ref, w1_ref, b1_ref, w2_ref, b2_ref,
                        o_ref, *, d_real):
    x = x_ref[...].astype(jnp.float32)                        # (tm, Cp)
    inv_d = jnp.float32(1.0 / d_real)
    mean = jnp.sum(x, axis=-1, keepdims=True) * inv_d
    col = jax.lax.broadcasted_iota(jnp.int32, x.shape, 1)
    diff = jnp.where(col < d_real, x - mean, 0.0)              # mask padded lanes
    var = jnp.sum(diff * diff, axis=-1, keepdims=True) * inv_d
    xn = diff * jax.lax.rsqrt(var + jnp.float32(_LN_EPS))
    xn = xn * g_ref[...].astype(jnp.float32) + be_ref[...].astype(jnp.float32)

    h = jnp.dot(xn.astype(w1_ref.dtype), w1_ref[...],
                preferred_element_type=jnp.float32)
    h = _gelu_exact(h + b1_ref[...].astype(jnp.float32))
    y = jnp.dot(h.astype(w2_ref.dtype), w2_ref[...],
                preferred_element_type=jnp.float32)
    y = y + b2_ref[...].astype(jnp.float32)
    o_ref[...] = (x + y).astype(o_ref.dtype)                   # residual


def channel_mixing(x, gamma, beta, w1, b1, w2, b2, *, tm=256):
    bdim, pdim, c = x.shape
    hdim = w1.shape[1]
    x2d = x.reshape(bdim * pdim, c)
    m = x2d.shape[0]
    cp = _round_up(c, 128)
    hp = _round_up(hdim, 128)
    tm_eff = min(tm, _round_up(m, 8))
    mp = _round_up(m, tm_eff)

    x_p = jnp.pad(x2d, ((0, mp - m), (0, cp - c)))
    g_p = jnp.pad(gamma, (0, cp - c)).reshape(1, cp)
    be_p = jnp.pad(beta, (0, cp - c)).reshape(1, cp)
    w1_p = jnp.pad(w1, ((0, cp - c), (0, hp - hdim)))
    b1_p = jnp.pad(b1, (0, hp - hdim)).reshape(1, hp)
    w2_p = jnp.pad(w2, ((0, hp - hdim), (0, cp - c)))
    b2_p = jnp.pad(b2, (0, cp - c)).reshape(1, cp)

    out = pl.pallas_call(
        functools.partial(_channel_mix_kernel, d_real=c),
        out_shape=jax.ShapeDtypeStruct((mp, cp), x.dtype),
        grid_spec=pltpu.PrefetchScalarGridSpec(
            num_scalar_prefetch=0,
            grid=(mp // tm_eff,),
            in_specs=[
                pl.BlockSpec((tm_eff, cp), lambda i: (i, 0)),  # x row tile
                pl.BlockSpec((1, cp), lambda i: (0, 0)),       # LN gamma
                pl.BlockSpec((1, cp), lambda i: (0, 0)),       # LN beta
                pl.BlockSpec((cp, hp), lambda i: (0, 0)),      # W1 (resident)
                pl.BlockSpec((1, hp), lambda i: (0, 0)),       # b1
                pl.BlockSpec((hp, cp), lambda i: (0, 0)),      # W2 (resident)
                pl.BlockSpec((1, cp), lambda i: (0, 0)),       # b2
            ],
            out_specs=pl.BlockSpec((tm_eff, cp), lambda i: (i, 0)),
        ),
        compiler_params=pltpu.CompilerParams(
            dimension_semantics=("parallel",),
            vmem_limit_bytes=_VMEM_LIMIT,
        ),
    )(x_p, g_p, be_p, w1_p, b1_p, w2_p, b2_p)
    return out[:m, :c].reshape(bdim, pdim, c)


# --------------------------------------------------------------------------------
# Kernel 3: token mixing  out = x + (MLP(LN(x)^T))^T,  per-batch (P, C) slab
# --------------------------------------------------------------------------------
def _token_mix_kernel(x_ref, g_ref, be_ref, w1_ref, b1_ref, w2_ref, b2_ref, o_ref):
    x = x_ref[0].astype(jnp.float32)                           # (P, C)
    mean = jnp.mean(x, axis=-1, keepdims=True)
    diff = x - mean
    var = jnp.mean(diff * diff, axis=-1, keepdims=True)
    xn = diff * jax.lax.rsqrt(var + jnp.float32(_LN_EPS))
    xn = xn * g_ref[...].astype(jnp.float32) + be_ref[...].astype(jnp.float32)

    t = xn.T                                                   # (C, P)
    h = jnp.dot(t.astype(w1_ref.dtype), w1_ref[...],
                preferred_element_type=jnp.float32)
    h = _gelu_exact(h + b1_ref[...].astype(jnp.float32))
    y = jnp.dot(h.astype(w2_ref.dtype), w2_ref[...],
                preferred_element_type=jnp.float32)
    y = y + b2_ref[...].astype(jnp.float32)                    # (C, P)
    out = (x + y.T).astype(o_ref.dtype)
    o_ref[...] = out.reshape(o_ref.shape)


def token_mixing(x, gamma, beta, w1, b1, w2, b2):
    bdim, pdim, c = x.shape
    htok = w1.shape[1]
    g = gamma.reshape(1, c)
    be = beta.reshape(1, c)
    b1r = b1.reshape(1, htok)
    b2r = b2.reshape(1, pdim)

    return pl.pallas_call(
        _token_mix_kernel,
        out_shape=jax.ShapeDtypeStruct((bdim, pdim, c), x.dtype),
        grid_spec=pltpu.PrefetchScalarGridSpec(
            num_scalar_prefetch=0,
            grid=(bdim,),
            in_specs=[
                pl.BlockSpec((1, pdim, c), lambda b: (b, 0, 0)),  # x slab
                pl.BlockSpec((1, c), lambda b: (0, 0)),           # LN gamma
                pl.BlockSpec((1, c), lambda b: (0, 0)),           # LN beta
                pl.BlockSpec((pdim, htok), lambda b: (0, 0)),     # W1 (resident)
                pl.BlockSpec((1, htok), lambda b: (0, 0)),        # b1
                pl.BlockSpec((htok, pdim), lambda b: (0, 0)),     # W2 (resident)
                pl.BlockSpec((1, pdim), lambda b: (0, 0)),        # b2
            ],
            out_specs=pl.BlockSpec((1, pdim, c), lambda b: (b, 0, 0)),
        ),
        compiler_params=pltpu.CompilerParams(
            dimension_semantics=("parallel",),
            vmem_limit_bytes=_VMEM_LIMIT,
        ),
    )(x, g, be, w1, b1r, w2, b2r)


# --------------------------------------------------------------------------------
# Kernel 4: final LayerNorm + global average pooling over patches, per batch
# --------------------------------------------------------------------------------
def _ln_pool_kernel(x_ref, g_ref, be_ref, o_ref):
    x = x_ref[0].astype(jnp.float32)                           # (P, C)
    mean = jnp.mean(x, axis=-1, keepdims=True)
    diff = x - mean
    var = jnp.mean(diff * diff, axis=-1, keepdims=True)
    xn = diff * jax.lax.rsqrt(var + jnp.float32(_LN_EPS))
    xn = xn * g_ref[...].astype(jnp.float32) + be_ref[...].astype(jnp.float32)
    pooled = jnp.mean(xn, axis=0, keepdims=True)               # (1, C)
    o_ref[...] = pooled.astype(o_ref.dtype).reshape(o_ref.shape)


def ln_pool(x, gamma, beta):
    bdim, pdim, c = x.shape
    g = gamma.reshape(1, c)
    be = beta.reshape(1, c)
    out = pl.pallas_call(
        _ln_pool_kernel,
        out_shape=jax.ShapeDtypeStruct((bdim, 1, c), x.dtype),
        grid_spec=pltpu.PrefetchScalarGridSpec(
            num_scalar_prefetch=0,
            grid=(bdim,),
            in_specs=[
                pl.BlockSpec((1, pdim, c), lambda b: (b, 0, 0)),
                pl.BlockSpec((1, c), lambda b: (0, 0)),
                pl.BlockSpec((1, c), lambda b: (0, 0)),
            ],
            out_specs=pl.BlockSpec((1, 1, c), lambda b: (b, 0, 0)),
        ),
        compiler_params=pltpu.CompilerParams(
            dimension_semantics=("parallel",),
            vmem_limit_bytes=_VMEM_LIMIT,
        ),
    )(x, g, be)
    return out.reshape(bdim, c)


# --------------------------------------------------------------------------------
# Full MLPMixer forward
# --------------------------------------------------------------------------------
@functools.partial(jax.jit, static_argnames=("patch_size",))
def mlp_mixer_forward(params, x, *, patch_size):
    bdim, cin, hh, ww = x.shape
    p = patch_size
    gh, gw = hh // p, ww // p

    # Patch extraction (layout plumbing; equals Conv2d(k=p, stride=p) + Rearrange).
    patches = x.reshape(bdim, cin, gh, p, gw, p)
    patches = patches.transpose(0, 2, 4, 1, 3, 5).reshape(bdim * gh * gw, cin * p * p)

    hidden_dim = params["embed_w"].shape[1]
    tok = linear(patches, params["embed_w"], params["embed_b"])
    xseq = tok.reshape(bdim, gh * gw, hidden_dim)

    for lp in params["layers"]:
        xseq = token_mixing(xseq, lp["ln1_g"], lp["ln1_b"],
                            lp["tw1"], lp["tb1"], lp["tw2"], lp["tb2"])
        xseq = channel_mixing(xseq, lp["ln2_g"], lp["ln2_b"],
                              lp["cw1"], lp["cb1"], lp["cw2"], lp["cb2"])

    pooled = ln_pool(xseq, params["lnf_g"], params["lnf_b"])
    logits = linear(pooled, params["cls_w"], params["cls_b"])
    return logits


# --------------------------------------------------------------------------------
# Pure-JAX reference (mirrors the PyTorch forward)
# --------------------------------------------------------------------------------
def _ref_ln(x, g, b):
    mean = x.mean(axis=-1, keepdims=True)
    var = ((x - mean) ** 2).mean(axis=-1, keepdims=True)
    return (x - mean) / jnp.sqrt(var + _LN_EPS) * g + b


def _ref_forward(params, x, patch_size):
    bdim, cin, hh, ww = x.shape
    p = patch_size
    gh, gw = hh // p, ww // p
    patches = x.reshape(bdim, cin, gh, p, gw, p)
    patches = patches.transpose(0, 2, 4, 1, 3, 5).reshape(bdim, gh * gw, cin * p * p)
    xseq = patches @ params["embed_w"] + params["embed_b"]
    for lp in params["layers"]:
        xn = _ref_ln(xseq, lp["ln1_g"], lp["ln1_b"])
        t = jnp.swapaxes(xn, 1, 2)
        h = _gelu_exact(t @ lp["tw1"] + lp["tb1"])
        y = h @ lp["tw2"] + lp["tb2"]
        xseq = xseq + jnp.swapaxes(y, 1, 2)
        xn = _ref_ln(xseq, lp["ln2_g"], lp["ln2_b"])
        h = _gelu_exact(xn @ lp["cw1"] + lp["cb1"])
        xseq = xseq + h @ lp["cw2"] + lp["cb2"]
    xn = _ref_ln(xseq, params["lnf_g"], params["lnf_b"])
    pooled = xn.mean(axis=1)
    return pooled @ params["cls_w"] + params["cls_b"]


def init_params(key, *, channels, patch_size, hidden_dim, tokens_hidden_dim,
                channels_hidden_dim, num_patches, num_layers, num_classes,
                dtype=jnp.float32):
    keys = iter(jax.random.split(key, 16 + 12 * num_layers))

    def rnd(shape, scale=0.05):
        return jax.random.normal(next(keys), shape, dtype=dtype) * scale

    params = {
        "embed_w": rnd((channels * patch_size * patch_size, hidden_dim)),
        "embed_b": rnd((hidden_dim,)),
        "layers": [],
        "lnf_g": 1.0 + rnd((hidden_dim,)),
        "lnf_b": rnd((hidden_dim,)),
        # Classifier weight zero-initialized per nn.init.zeros_ in the spec.
        "cls_w": jnp.zeros((hidden_dim, num_classes), dtype),
        "cls_b": rnd((num_classes,)),
    }
    for _ in range(num_layers):
        params["layers"].append({
            "ln1_g": 1.0 + rnd((hidden_dim,)),
            "ln1_b": rnd((hidden_dim,)),
            "tw1": rnd((num_patches, tokens_hidden_dim)),
            "tb1": rnd((tokens_hidden_dim,)),
            "tw2": rnd((tokens_hidden_dim, num_patches)),
            "tb2": rnd((num_patches,)),
            "ln2_g": 1.0 + rnd((hidden_dim,)),
            "ln2_b": rnd((hidden_dim,)),
            "cw1": rnd((hidden_dim, channels_hidden_dim)),
            "cb1": rnd((channels_hidden_dim,)),
            "cw2": rnd((channels_hidden_dim, hidden_dim)),
            "cb2": rnd((hidden_dim,)),
        })
    return params


if __name__ == "__main__":
    # Small shapes consistent with the module structure.
    batch = 2
    channels = 3
    image_size = 16
    patch_size = 4
    hidden_dim = 32
    tokens_hidden_dim = 16
    channels_hidden_dim = 64
    num_layers = 2
    num_classes = 10
    num_patches = (image_size // patch_size) ** 2  # 16

    key = jax.random.PRNGKey(0)
    kp, kx, kc = jax.random.split(key, 3)

    params = init_params(
        kp, channels=channels, patch_size=patch_size, hidden_dim=hidden_dim,
        tokens_hidden_dim=tokens_hidden_dim, channels_hidden_dim=channels_hidden_dim,
        num_patches=num_patches, num_layers=num_layers, num_classes=num_classes)

    x = jax.random.normal(kx, (batch, channels, image_size, image_size),
                          dtype=jnp.float32)

    logits = mlp_mixer_forward(params, x, patch_size=patch_size)
    jax.block_until_ready(logits)
    assert logits.shape == (batch, num_classes)

    ref = _ref_forward(params, x, patch_size)
    assert jnp.allclose(logits, ref, atol=1e-4, rtol=1e-4), "mismatch vs reference"

    # Extra check with a non-zero classifier weight to exercise the final matmul.
    params2 = dict(params)
    params2["cls_w"] = jax.random.normal(
        kc, (hidden_dim, num_classes), dtype=jnp.float32) * 0.05
    logits2 = mlp_mixer_forward(params2, x, patch_size=patch_size)
    jax.block_until_ready(logits2)
    ref2 = _ref_forward(params2, x, patch_size)
    assert jnp.allclose(logits2, ref2, atol=1e-4, rtol=1e-4), "mismatch (cls weights)"

    print("KERNEL_OK")
</pallas_src>

<mosaic_0001>
module attributes {stable_mosaic.version = 11 : i64} {
  func.func @_linear_kernel(%arg0: i32, %arg1: memref<32x128xf32, #tpu.memory_space<vmem>>, %arg2: memref<128x128xf32, #tpu.memory_space<vmem>>, %arg3: memref<1x128xf32, #tpu.memory_space<vmem>>, %arg4: memref<32x128xf32, #tpu.memory_space<vmem>>) attributes {dimension_semantics = [#tpu.dimension_semantics<parallel>], iteration_bounds = array<i64: 1>, scalar_prefetch = 0 : i64, scratch_operands = 0 : i64, tpu.core_type = #tpu.core_type<tc>, window_params = [{transform_indices = @transform_0, window_bounds = array<i64: 32, 128>}, {pipeline_mode = #tpu.pipeline_mode<synchronous>, transform_indices = @transform_1, window_bounds = array<i64: 128, 128>}, {pipeline_mode = #tpu.pipeline_mode<synchronous>, transform_indices = @transform_2, window_bounds = array<i64: 1, 128>}, {transform_indices = @transform_3, window_bounds = array<i64: 32, 128>}]} {
    %c0 = arith.constant 0 : index
    %c0_0 = arith.constant 0 : index
    %0 = vector.load %arg1[%c0, %c0_0] : memref<32x128xf32, #tpu.memory_space<vmem>>, vector<32x128xf32>
    %c0_1 = arith.constant 0 : index
    %c0_2 = arith.constant 0 : index
    %1 = vector.load %arg2[%c0_1, %c0_2] : memref<128x128xf32, #tpu.memory_space<vmem>>, vector<128x128xf32>
    %cst = arith.constant dense<0.000000e+00> : vector<32x128xf32>
    %2 = tpu.matmul %0, %1, %cst {dimension_numbers = #tpu.dot_dimension_numbers<[1], [0], [0], [1], [0, 0, 1, 1], [], []>} : vector<32x128xf32>, vector<128x128xf32>, vector<32x128xf32> -> vector<32x128xf32>
    %c0_3 = arith.constant 0 : index
    %c0_4 = arith.constant 0 : index
    %3 = vector.load %arg3[%c0_3, %c0_4] : memref<1x128xf32, #tpu.memory_space<vmem>>, vector<1x128xf32>
    %4 = vector.broadcast %3 : vector<1x128xf32> to vector<32x128xf32>
    %5 = arith.addf %2, %4 : vector<32x128xf32>
    %c0_5 = arith.constant 0 : index
    %c0_6 = arith.constant 0 : index
    %6 = vector.load %arg4[%c0_5, %c0_6] : memref<32x128xf32, #tpu.memory_space<vmem>>, vector<32x128xf32>
    tpu.vector_store %arg4[%c0_5, %c0_6], %5 {strides = array<i32>} : memref<32x128xf32, #tpu.memory_space<vmem>>, vector<32x128xf32>,
    return
  }
  func.func @transform_0(%arg0: i32) -> (i32, i32) {
    %c0_i32 = arith.constant 0 : i32
    %c0_i32_0 = arith.constant 0 : i32
    return %arg0, %c0_i32 : i32, i32
  }
  func.func @transform_1(%arg0: i32) -> (i32, i32) {
    %c0_i32 = arith.constant 0 : i32
    %c0_i32_0 = arith.constant 0 : i32
    %c0_i32_1 = arith.constant 0 : i32
    return %c0_i32, %c0_i32_0 : i32, i32
  }
  func.func @transform_2(%arg0: i32) -> (i32, i32) {
    %c0_i32 = arith.constant 0 : i32
    %c0_i32_0 = arith.constant 0 : i32
    %c0_i32_1 = arith.constant 0 : i32
    return %c0_i32, %c0_i32_0 : i32, i32
  }
  func.func @transform_3(%arg0: i32) -> (i32, i32) {
    %c0_i32 = arith.constant 0 : i32
    %c0_i32_0 = arith.constant 0 : i32
    return %arg0, %c0_i32 : i32, i32
  }
}

module attributes {stable_mosaic.version = 11 : i64} {
  func.func @_token_mix_kernel(%arg0: i32, %arg1: memref<1x16x32xf32, #tpu.memory_space<vmem>>, %arg2: memref<1x32xf32, #tpu.memory_space<vmem>>, %arg3: memref<1x32xf32, #tpu.memory_space<vmem>>, %arg4: memref<16x16xf32, #tpu.memory_space<vmem>>, %arg5: memref<1x16xf32, #tpu.memory_space<vmem>>, %arg6: memref<16x16xf32, #tpu.memory_space<vmem>>, %arg7: memref<1x16xf32, #tpu.memory_space<vmem>>, %arg8: memref<1x16x32xf32, #tpu.memory_space<vmem>>) attributes {dimension_semantics = [#tpu.dimension_semantics<parallel>], iteration_bounds = array<i64: 2>, scalar_prefetch = 0 : i64, scratch_operands = 0 : i64, tpu.core_type = #tpu.core_type<tc>, window_params = [{transform_indices = @transform_0, window_bounds = array<i64: 1, 16, 32>}, {pipeline_mode = #tpu.pipeline_mode<synchronous>, transform_indices = @transform_1, window_bounds = array<i64: 1, 32>}, {pipeline_mode = #tpu.pipeline_mode<synchronous>, transform_indices = @transform_2, window_bounds = array<i64: 1, 32>}, {pipeline_mode = #tpu.pipeline_mode<synchronous>, transform_indices = @transform_3, window_bounds = array<i64: 16, 16>}, {pipeline_mode = #tpu.pipeline_mode<synchronous>, transform_indices = @transform_4, window_bounds = array<i64: 1, 16>}, {pipeline_mode = #tpu.pipeline_mode<synchronous>, transform_indices = @transform_5, window_bounds = array<i64: 16, 16>}, {pipeline_mode = #tpu.pipeline_mode<synchronous>, transform_indices = @transform_6, window_bounds = array<i64: 1, 16>}, {transform_indices = @transform_7, window_bounds = array<i64: 1, 16, 32>}]} {
    %c0 = arith.constant 0 : index
    %c0_0 = arith.constant 0 : index
    %c0_1 = arith.constant 0 : index
    %0 = vector.load %arg1[%c0, %c0_0, %c0_1] : memref<1x16x32xf32, #tpu.memory_space<vmem>>, vector<1x16x32xf32>
    %1 = vector.shape_cast %0 : vector<1x16x32xf32> to vector<16x32xf32>
    %cst = arith.constant dense<0.000000e+00> : vector<16xf32>
    %2 = vector.multi_reduction <add>, %1, %cst [1] : vector<16x32xf32> to vector<16xf32>
    %3 = vector.shape_cast %2 : vector<16xf32> to vector<16x1xf32>
    %cst_2 = arith.constant 3.200000e+01 : f32
    %4 = vector.broadcast %cst_2 : f32 to vector<16x1xf32>
    %5 = arith.divf %3, %4 : vector<16x1xf32>
    %6 = vector.broadcast %5 : vector<16x1xf32> to vector<16x32xf32>
    %7 = arith.subf %1, %6 : vector<16x32xf32>
    %8 = arith.mulf %7, %7 : vector<16x32xf32>
    %cst_3 = arith.constant dense<0.000000e+00> : vector<16xf32>
    %9 = vector.multi_reduction <add>, %8, %cst_3 [1] : vector<16x32xf32> to vector<16xf32>
    %10 = vector.shape_cast %9 : vector<16xf32> to vector<16x1xf32>
    %cst_4 = arith.constant 3.200000e+01 : f32
    %11 = vector.broadcast %cst_4 : f32 to vector<16x1xf32>
    %12 = arith.divf %10, %11 : vector<16x1xf32>
    %cst_5 = arith.constant 9.99999974E-6 : f32
    %13 = vector.broadcast %cst_5 : f32 to vector<16x1xf32>
    %14 = arith.addf %12, %13 : vector<16x1xf32>
    %15 = math.rsqrt %14 : vector<16x1xf32>
    %16 = vector.broadcast %15 : vector<16x1xf32> to vector<16x32xf32>
    %17 = arith.mulf %7, %16 : vector<16x32xf32>
    %c0_6 = arith.constant 0 : index
    %c0_7 = arith.constant 0 : index
    %18 = vector.load %arg2[%c0_6, %c0_7] : memref<1x32xf32, #tpu.memory_space<vmem>>, vector<1x32xf32>
    %19 = vector.broadcast %18 : vector<1x32xf32> to vector<16x32xf32>
    %20 = arith.mulf %17, %19 : vector<16x32xf32>
    %c0_8 = arith.constant 0 : index
    %c0_9 = arith.constant 0 : index
    %21 = vector.load %arg3[%c0_8, %c0_9] : memref<1x32xf32, #tpu.memory_space<vmem>>, vector<1x32xf32>
    %22 = vector.broadcast %21 : vector<1x32xf32> to vector<16x32xf32>
    %23 = arith.addf %20, %22 : vector<16x32xf32>
    %24 = tpu.transpose %23, [1, 0] : vector<16x32xf32> -> vector<32x16xf32>
    %c0_10 = arith.constant 0 : index
    %c0_11 = arith.constant 0 : index
    %25 = vector.load %arg4[%c0_10, %c0_11] : memref<16x16xf32, #tpu.memory_space<vmem>>, vector<16x16xf32>
    %cst_12 = arith.constant dense<0.000000e+00> : vector<32x16xf32>
    %26 = tpu.matmul %24, %25, %cst_12 {dimension_numbers = #tpu.dot_dimension_numbers<[1], [0], [0], [1], [0, 0, 1, 1], [], []>} : vector<32x16xf32>, vector<16x16xf32>, vector<32x16xf32> -> vector<32x16xf32>
    %c0_13 = arith.constant 0 : index
    %c0_14 = arith.constant 0 : index
    %27 = vector.load %arg5[%c0_13, %c0_14] : memref<1x16xf32, #tpu.memory_space<vmem>>, vector<1x16xf32>
    %28 = vector.broadcast %27 : vector<1x16xf32> to vector<32x16xf32>
    %29 = arith.addf %26, %28 : vector<32x16xf32>
    %cst_15 = arith.constant 5.000000e-01 : f32
    %30 = vector.broadcast %cst_15 : f32 to vector<32x16xf32>
    %31 = arith.mulf %30, %29 : vector<32x16xf32>
    %cst_16 = arith.constant 0.707106769 : f32
    %32 = vector.broadcast %cst_16 : f32 to vector<32x16xf32>
    %33 = arith.mulf %29, %32 : vector<32x16xf32>
    %34 = math.erf %33 : vector<32x16xf32>
    %cst_17 = arith.constant 1.000000e+00 : f32
    %35 = vector.broadcast %cst_17 : f32 to vector<32x16xf32>
    %36 = arith.addf %35, %34 : vector<32x16xf32>
    %37 = arith.mulf %31, %36 : vector<32x16xf32>
    %c0_18 = arith.constant 0 : index
    %c0_19 = arith.constant 0 : index
    %38 = vector.load %arg6[%c0_18, %c0_19] : memref<16x16xf32, #tpu.memory_space<vmem>>, vector<16x16xf32>
    %cst_20 = arith.constant dense<0.000000e+00> : vector<32x16xf32>
    %39 = tpu.matmul %37, %38, %cst_20 {dimension_numbers = #tpu.dot_dimension_numbers<[1], [0], [0], [1], [0, 0, 1, 1], [], []>} : vector<32x16xf32>, vector<16x16xf32>, vector<32x16xf32> -> vector<32x16xf32>
    %c0_21 = arith.constant 0 : index
    %c0_22 = arith.constant 0 : index
    %40 = vector.load %arg7[%c0_21, %c0_22] : memref<1x16xf32, #tpu.memory_space<vmem>>, vector<1x16xf32>
    %41 = vector.broadcast %40 : vector<1x16xf32> to vector<32x16xf32>
    %42 = arith.addf %39, %41 : vector<32x16xf32>
    %43 = tpu.transpose %42, [1, 0] : vector<32x16xf32> -> vector<16x32xf32>
    %44 = arith.addf %1, %43 : vector<16x32xf32>
    %45 = vector.shape_cast %44 : vector<16x32xf32> to vector<1x16x32xf32>
    %c0_23 = arith.constant 0 : index
    %c0_24 = arith.constant 0 : index
    %c0_25 = arith.constant 0 : index
    %46 = vector.load %arg8[%c0_23, %c0_24, %c0_25] : memref<1x16x32xf32, #tpu.memory_space<vmem>>, vector<1x16x32xf32>
    tpu.vector_store %arg8[%c0_23, %c0_24, %c0_25], %45 {strides = array<i32>} : memref<1x16x32xf32, #tpu.memory_space<vmem>>, vector<1x16x32xf32>,
    return
  }
  func.func @transform_0(%arg0: i32) -> (i32, i32, i32) {
    %c0_i32 = arith.constant 0 : i32
    %c0_i32_0 = arith.constant 0 : i32
    %c0_i32_1 = arith.constant 0 : i32
    return %arg0, %c0_i32, %c0_i32_0 : i32, i32, i32
  }
  func.func @transform_1(%arg0: i32) -> (i32, i32) {
    %c0_i32 = arith.constant 0 : i32
    %c0_i32_0 = arith.constant 0 : i32
    %c0_i32_1 = arith.constant 0 : i32
    return %c0_i32, %c0_i32_0 : i32, i32
  }
  func.func @transform_2(%arg0: i32) -> (i32, i32) {
    %c0_i32 = arith.constant 0 : i32
    %c0_i32_0 = arith.constant 0 : i32
    %c0_i32_1 = arith.constant 0 : i32
    return %c0_i32, %c0_i32_0 : i32, i32
  }
  func.func @transform_3(%arg0: i32) -> (i32, i32) {
    %c0_i32 = arith.constant 0 : i32
    %c0_i32_0 = arith.constant 0 : i32
    %c0_i32_1 = arith.constant 0 : i32
    return %c0_i32, %c0_i32_0 : i32, i32
  }
  func.func @transform_4(%arg0: i32) -> (i32, i32) {
    %c0_i32 = arith.constant 0 : i32
    %c0_i32_0 = arith.constant 0 : i32
    %c0_i32_1 = arith.constant 0 : i32
    return %c0_i32, %c0_i32_0 : i32, i32
  }
  func.func @transform_5(%arg0: i32) -> (i32, i32) {
    %c0_i32 = arith.constant 0 : i32
    %c0_i32_0 = arith.constant 0 : i32
    %c0_i32_1 = arith.constant 0 : i32
    return %c0_i32, %c0_i32_0 : i32, i32
  }
  func.func @transform_6(%arg0: i32) -> (i32, i32) {
    %c0_i32 = arith.constant 0 : i32
    %c0_i32_0 = arith.constant 0 : i32
    %c0_i32_1 = arith.constant 0 : i32
    return %c0_i32, %c0_i32_0 : i32, i32
  }
  func.func @transform_7(%arg0: i32) -> (i32, i32, i32) {
    %c0_i32 = arith.constant 0 : i32
    %c0_i32_0 = arith.constant 0 : i32
    %c0_i32_1 = arith.constant 0 : i32
    return %arg0, %c0_i32, %c0_i32_0 : i32, i32, i32
  }
}

module attributes {stable_mosaic.version = 11 : i64} {
  func.func @_channel_mix_kernel(%arg0: i32, %arg1: memref<32x128xf32, #tpu.memory_space<vmem>>, %arg2: memref<1x128xf32, #tpu.memory_space<vmem>>, %arg3: memref<1x128xf32, #tpu.memory_space<vmem>>, %arg4: memref<128x128xf32, #tpu.memory_space<vmem>>, %arg5: memref<1x128xf32, #tpu.memory_space<vmem>>, %arg6: memref<128x128xf32, #tpu.memory_space<vmem>>, %arg7: memref<1x128xf32, #tpu.memory_space<vmem>>, %arg8: memref<32x128xf32, #tpu.memory_space<vmem>>) attributes {dimension_semantics = [#tpu.dimension_semantics<parallel>], iteration_bounds = array<i64: 1>, scalar_prefetch = 0 : i64, scratch_operands = 0 : i64, tpu.core_type = #tpu.core_type<tc>, window_params = [{transform_indices = @transform_0, window_bounds = array<i64: 32, 128>}, {pipeline_mode = #tpu.pipeline_mode<synchronous>, transform_indices = @transform_1, window_bounds = array<i64: 1, 128>}, {pipeline_mode = #tpu.pipeline_mode<synchronous>, transform_indices = @transform_2, window_bounds = array<i64: 1, 128>}, {pipeline_mode = #tpu.pipeline_mode<synchronous>, transform_indices = @transform_3, window_bounds = array<i64: 128, 128>}, {pipeline_mode = #tpu.pipeline_mode<synchronous>, transform_indices = @transform_4, window_bounds = array<i64: 1, 128>}, {pipeline_mode = #tpu.pipeline_mode<synchronous>, transform_indices = @transform_5, window_bounds = array<i64: 128, 128>}, {pipeline_mode = #tpu.pipeline_mode<synchronous>, transform_indices = @transform_6, window_bounds = array<i64: 1, 128>}, {transform_indices = @transform_7, window_bounds = array<i64: 32, 128>}]} {
    %c0 = arith.constant 0 : index
    %c0_0 = arith.constant 0 : index
    %0 = vector.load %arg1[%c0, %c0_0] : memref<32x128xf32, #tpu.memory_space<vmem>>, vector<32x128xf32>
    %cst = arith.constant dense<0.000000e+00> : vector<32xf32>
    %1 = vector.multi_reduction <add>, %0, %cst [1] : vector<32x128xf32> to vector<32xf32>
    %2 = vector.shape_cast %1 : vector<32xf32> to vector<32x1xf32>
    %cst_1 = arith.constant 3.125000e-02 : f32
    %3 = vector.broadcast %cst_1 : f32 to vector<32x1xf32>
    %4 = arith.mulf %2, %3 : vector<32x1xf32>
    %5 = tpu.iota {dimensions = array<i32: 1>} : vector<32x128xi32>
    %c32_i32 = arith.constant 32 : i32
    %6 = vector.broadcast %c32_i32 : i32 to vector<32x128xi32>
    %7 = arith.cmpi slt, %5, %6 : vector<32x128xi32>
    %8 = vector.broadcast %4 : vector<32x1xf32> to vector<32x128xf32>
    %9 = arith.subf %0, %8 : vector<32x128xf32>
    %cst_2 = arith.constant 0.000000e+00 : f32
    %10 = vector.broadcast %cst_2 : f32 to vector<32x128xf32>
    %11 = arith.select %7, %9, %10 : vector<32x128xi1>, vector<32x128xf32>
    %12 = arith.mulf %11, %11 : vector<32x128xf32>
    %cst_3 = arith.constant dense<0.000000e+00> : vector<32xf32>
    %13 = vector.multi_reduction <add>, %12, %cst_3 [1] : vector<32x128xf32> to vector<32xf32>
    %14 = vector.shape_cast %13 : vector<32xf32> to vector<32x1xf32>
    %cst_4 = arith.constant 3.125000e-02 : f32
    %15 = vector.broadcast %cst_4 : f32 to vector<32x1xf32>
    %16 = arith.mulf %14, %15 : vector<32x1xf32>
    %cst_5 = arith.constant 9.99999974E-6 : f32
    %17 = vector.broadcast %cst_5 : f32 to vector<32x1xf32>
    %18 = arith.addf %16, %17 : vector<32x1xf32>
    %19 = math.rsqrt %18 : vector<32x1xf32>
    %20 = vector.broadcast %19 : vector<32x1xf32> to vector<32x128xf32>
    %21 = arith.mulf %11, %20 : vector<32x128xf32>
    %c0_6 = arith.constant 0 : index
    %c0_7 = arith.constant 0 : index
    %22 = vector.load %arg2[%c0_6, %c0_7] : memref<1x128xf32, #tpu.memory_space<vmem>>, vector<1x128xf32>
    %23 = vector.broadcast %22 : vector<1x128xf32> to vector<32x128xf32>
    %24 = arith.mulf %21, %23 : vector<32x128xf32>
    %c0_8 = arith.constant 0 : index
    %c0_9 = arith.constant 0 : index
    %25 = vector.load %arg3[%c0_8, %c0_9] : memref<1x128xf32, #tpu.memory_space<vmem>>, vector<1x128xf32>
    %26 = vector.broadcast %25 : vector<1x128xf32> to vector<32x128xf32>
    %27 = arith.addf %24, %26 : vector<32x128xf32>
    %c0_10 = arith.constant 0 : index
    %c0_11 = arith.constant 0 : index
    %28 = vector.load %arg4[%c0_10, %c0_11] : memref<128x128xf32, #tpu.memory_space<vmem>>, vector<128x128xf32>
    %cst_12 = arith.constant dense<0.000000e+00> : vector<32x128xf32>
    %29 = tpu.matmul %27, %28, %cst_12 {dimension_numbers = #tpu.dot_dimension_numbers<[1], [0], [0], [1], [0, 0, 1, 1], [], []>} : vector<32x128xf32>, vector<128x128xf32>, vector<32x128xf32> -> vector<32x128xf32>
    %c0_13 = arith.constant 0 : index
    %c0_14 = arith.constant 0 : index
    %30 = vector.load %arg5[%c0_13, %c0_14] : memref<1x128xf32, #tpu.memory_space<vmem>>, vector<1x128xf32>
    %31 = vector.broadcast %30 : vector<1x128xf32> to vector<32x128xf32>
    %32 = arith.addf %29, %31 : vector<32x128xf32>
    %cst_15 = arith.constant 5.000000e-01 : f32
    %33 = vector.broadcast %cst_15 : f32 to vector<32x128xf32>
    %34 = arith.mulf %33, %32 : vector<32x128xf32>
    %cst_16 = arith.constant 0.707106769 : f32
    %35 = vector.broadcast %cst_16 : f32 to vector<32x128xf32>
    %36 = arith.mulf %32, %35 : vector<32x128xf32>
    %37 = math.erf %36 : vector<32x128xf32>
    %cst_17 = arith.constant 1.000000e+00 : f32
    %38 = vector.broadcast %cst_17 : f32 to vector<32x128xf32>
    %39 = arith.addf %38, %37 : vector<32x128xf32>
    %40 = arith.mulf %34, %39 : vector<32x128xf32>
    %c0_18 = arith.constant 0 : index
    %c0_19 = arith.constant 0 : index
    %41 = vector.load %arg6[%c0_18, %c0_19] : memref<128x128xf32, #tpu.memory_space<vmem>>, vector<128x128xf32>
    %cst_20 = arith.constant dense<0.000000e+00> : vector<32x128xf32>
    %42 = tpu.matmul %40, %41, %cst_20 {dimension_numbers = #tpu.dot_dimension_numbers<[1], [0], [0], [1], [0, 0, 1, 1], [], []>} : vector<32x128xf32>, vector<128x128xf32>, vector<32x128xf32> -> vector<32x128xf32>
    %c0_21 = arith.constant 0 : index
    %c0_22 = arith.constant 0 : index
    %43 = vector.load %arg7[%c0_21, %c0_22] : memref<1x128xf32, #tpu.memory_space<vmem>>, vector<1x128xf32>
    %44 = vector.broadcast %43 : vector<1x128xf32> to vector<32x128xf32>
    %45 = arith.addf %42, %44 : vector<32x128xf32>
    %46 = arith.addf %0, %45 : vector<32x128xf32>
    %c0_23 = arith.constant 0 : index
    %c0_24 = arith.constant 0 : index
    %47 = vector.load %arg8[%c0_23, %c0_24] : memref<32x128xf32, #tpu.memory_space<vmem>>, vector<32x128xf32>
    tpu.vector_store %arg8[%c0_23, %c0_24], %46 {strides = array<i32>} : memref<32x128xf32, #tpu.memory_space<vmem>>, vector<32x128xf32>,
    return
  }
  func.func @transform_0(%arg0: i32) -> (i32, i32) {
    %c0_i32 = arith.constant 0 : i32
    %c0_i32_0 = arith.constant 0 : i32
    return %arg0, %c0_i32 : i32, i32
  }
  func.func @transform_1(%arg0: i32) -> (i32, i32) {
    %c0_i32 = arith.constant 0 : i32
    %c0_i32_0 = arith.constant 0 : i32
    %c0_i32_1 = arith.constant 0 : i32
    return %c0_i32, %c0_i32_0 : i32, i32
  }
  func.func @transform_2(%arg0: i32) -> (i32, i32) {
    %c0_i32 = arith.constant 0 : i32
    %c0_i32_0 = arith.constant 0 : i32
    %c0_i32_1 = arith.constant 0 : i32
    return %c0_i32, %c0_i32_0 : i32, i32
  }
  func.func @transform_3(%arg0: i32) -> (i32, i32) {
    %c0_i32 = arith.constant 0 : i32
    %c0_i32_0 = arith.constant 0 : i32
    %c0_i32_1 = arith.constant 0 : i32
    return %c0_i32, %c0_i32_0 : i32, i32
  }
  func.func @transform_4(%arg0: i32) -> (i32, i32) {
    %c0_i32 = arith.constant 0 : i32
    %c0_i32_0 = arith.constant 0 : i32
    %c0_i32_1 = arith.constant 0 : i32
    return %c0_i32, %c0_i32_0 : i32, i32
  }
  func.func @transform_5(%arg0: i32) -> (i32, i32) {
    %c0_i32 = arith.constant 0 : i32
    %c0_i32_0 = arith.constant 0 : i32
    %c0_i32_1 = arith.constant 0 : i32
    return %c0_i32, %c0_i32_0 : i32, i32
  }
  func.func @transform_6(%arg0: i32) -> (i32, i32) {
    %c0_i32 = arith.constant 0 : i32
    %c0_i32_0 = arith.constant 0 : i32
    %c0_i32_1 = arith.constant 0 : i32
    return %c0_i32, %c0_i32_0 : i32, i32
  }
  func.func @transform_7(%arg0: i32) -> (i32, i32) {
    %c0_i32 = arith.constant 0 : i32
    %c0_i32_0 = arith.constant 0 : i32
    return %arg0, %c0_i32 : i32, i32
  }
}

module attributes {stable_mosaic.version = 11 : i64} {
  func.func @_ln_pool_kernel(%arg0: i32, %arg1: memref<1x16x32xf32, #tpu.memory_space<vmem>>, %arg2: memref<1x32xf32, #tpu.memory_space<vmem>>, %arg3: memref<1x32xf32, #tpu.memory_space<vmem>>, %arg4: memref<1x1x32xf32, #tpu.memory_space<vmem>>) attributes {dimension_semantics = [#tpu.dimension_semantics<parallel>], iteration_bounds = array<i64: 2>, scalar_prefetch = 0 : i64, scratch_operands = 0 : i64, tpu.core_type = #tpu.core_type<tc>, window_params = [{transform_indices = @transform_0, window_bounds = array<i64: 1, 16, 32>}, {pipeline_mode = #tpu.pipeline_mode<synchronous>, transform_indices = @transform_1, window_bounds = array<i64: 1, 32>}, {pipeline_mode = #tpu.pipeline_mode<synchronous>, transform_indices = @transform_2, window_bounds = array<i64: 1, 32>}, {transform_indices = @transform_3, window_bounds = array<i64: 1, 1, 32>}]} {
    %c0 = arith.constant 0 : index
    %c0_0 = arith.constant 0 : index
    %c0_1 = arith.constant 0 : index
    %0 = vector.load %arg1[%c0, %c0_0, %c0_1] : memref<1x16x32xf32, #tpu.memory_space<vmem>>, vector<1x16x32xf32>
    %1 = vector.shape_cast %0 : vector<1x16x32xf32> to vector<16x32xf32>
    %cst = arith.constant dense<0.000000e+00> : vector<16xf32>
    %2 = vector.multi_reduction <add>, %1, %cst [1] : vector<16x32xf32> to vector<16xf32>
    %3 = vector.shape_cast %2 : vector<16xf32> to vector<16x1xf32>
    %cst_2 = arith.constant 3.200000e+01 : f32
    %4 = vector.broadcast %cst_2 : f32 to vector<16x1xf32>
    %5 = arith.divf %3, %4 : vector<16x1xf32>
    %6 = vector.broadcast %5 : vector<16x1xf32> to vector<16x32xf32>
    %7 = arith.subf %1, %6 : vector<16x32xf32>
    %8 = arith.mulf %7, %7 : vector<16x32xf32>
    %cst_3 = arith.constant dense<0.000000e+00> : vector<16xf32>
    %9 = vector.multi_reduction <add>, %8, %cst_3 [1] : vector<16x32xf32> to vector<16xf32>
    %10 = vector.shape_cast %9 : vector<16xf32> to vector<16x1xf32>
    %cst_4 = arith.constant 3.200000e+01 : f32
    %11 = vector.broadcast %cst_4 : f32 to vector<16x1xf32>
    %12 = arith.divf %10, %11 : vector<16x1xf32>
    %cst_5 = arith.constant 9.99999974E-6 : f32
    %13 = vector.broadcast %cst_5 : f32 to vector<16x1xf32>
    %14 = arith.addf %12, %13 : vector<16x1xf32>
    %15 = math.rsqrt %14 : vector<16x1xf32>
    %16 = vector.broadcast %15 : vector<16x1xf32> to vector<16x32xf32>
    %17 = arith.mulf %7, %16 : vector<16x32xf32>
    %c0_6 = arith.constant 0 : index
    %c0_7 = arith.constant 0 : index
    %18 = vector.load %arg2[%c0_6, %c0_7] : memref<1x32xf32, #tpu.memory_space<vmem>>, vector<1x32xf32>
    %19 = vector.broadcast %18 : vector<1x32xf32> to vector<16x32xf32>
    %20 = arith.mulf %17, %19 : vector<16x32xf32>
    %c0_8 = arith.constant 0 : index
    %c0_9 = arith.constant 0 : index
    %21 = vector.load %arg3[%c0_8, %c0_9] : memref<1x32xf32, #tpu.memory_space<vmem>>, vector<1x32xf32>
    %22 = vector.broadcast %21 : vector<1x32xf32> to vector<16x32xf32>
    %23 = arith.addf %20, %22 : vector<16x32xf32>
    %cst_10 = arith.constant dense<0.000000e+00> : vector<32xf32>
    %24 = vector.multi_reduction <add>, %23, %cst_10 [0] : vector<16x32xf32> to vector<32xf32>
    %25 = vector.shape_cast %24 : vector<32xf32> to vector<1x32xf32>
    %cst_11 = arith.constant 1.600000e+01 : f32
    %26 = vector.broadcast %cst_11 : f32 to vector<1x32xf32>
    %27 = arith.divf %25, %26 : vector<1x32xf32>
    %28 = vector.shape_cast %27 : vector<1x32xf32> to vector<1x1x32xf32>
    %c0_12 = arith.constant 0 : index
    %c0_13 = arith.constant 0 : index
    %c0_14 = arith.constant 0 : index
    %29 = vector.load %arg4[%c0_12, %c0_13, %c0_14] : memref<1x1x32xf32, #tpu.memory_space<vmem>>, vector<1x1x32xf32>
    tpu.vector_store %arg4[%c0_12, %c0_13, %c0_14], %28 {strides = array<i32>} : memref<1x1x32xf32, #tpu.memory_space<vmem>>, vector<1x1x32xf32>,
    return
  }
  func.func @transform_0(%arg0: i32) -> (i32, i32, i32) {
    %c0_i32 = arith.constant 0 : i32
    %c0_i32_0 = arith.constant 0 : i32
    %c0_i32_1 = arith.constant 0 : i32
    return %arg0, %c0_i32, %c0_i32_0 : i32, i32, i32
  }
  func.func @transform_1(%arg0: i32) -> (i32, i32) {
    %c0_i32 = arith.constant 0 : i32
    %c0_i32_0 = arith.constant 0 : i32
    %c0_i32_1 = arith.constant 0 : i32
    return %c0_i32, %c0_i32_0 : i32, i32
  }
  func.func @transform_2(%arg0: i32) -> (i32, i32) {
    %c0_i32 = arith.constant 0 : i32
    %c0_i32_0 = arith.constant 0 : i32
    %c0_i32_1 = arith.constant 0 : i32
    return %c0_i32, %c0_i32_0 : i32, i32
  }
  func.func @transform_3(%arg0: i32) -> (i32, i32, i32) {
    %c0_i32 = arith.constant 0 : i32
    %c0_i32_0 = arith.constant 0 : i32
    %c0_i32_1 = arith.constant 0 : i32
    return %arg0, %c0_i32, %c0_i32_0 : i32, i32, i32
  }
}

module attributes {stable_mosaic.version = 11 : i64} {
  func.func @_linear_kernel(%arg0: i32, %arg1: memref<8x128xf32, #tpu.memory_space<vmem>>, %arg2: memref<128x128xf32, #tpu.memory_space<vmem>>, %arg3: memref<1x128xf32, #tpu.memory_space<vmem>>, %arg4: memref<8x128xf32, #tpu.memory_space<vmem>>) attributes {dimension_semantics = [#tpu.dimension_semantics<parallel>], iteration_bounds = array<i64: 1>, scalar_prefetch = 0 : i64, scratch_operands = 0 : i64, tpu.core_type = #tpu.core_type<tc>, window_params = [{transform_indices = @transform_0, window_bounds = array<i64: 8, 128>}, {pipeline_mode = #tpu.pipeline_mode<synchronous>, transform_indices = @transform_1, window_bounds = array<i64: 128, 128>}, {pipeline_mode = #tpu.pipeline_mode<synchronous>, transform_indices = @transform_2, window_bounds = array<i64: 1, 128>}, {transform_indices = @transform_3, window_bounds = array<i64: 8, 128>}]} {
    %c0 = arith.constant 0 : index
    %c0_0 = arith.constant 0 : index
    %0 = vector.load %arg1[%c0, %c0_0] : memref<8x128xf32, #tpu.memory_space<vmem>>, vector<8x128xf32>
    %c0_1 = arith.constant 0 : index
    %c0_2 = arith.constant 0 : index
    %1 = vector.load %arg2[%c0_1, %c0_2] : memref<128x128xf32, #tpu.memory_space<vmem>>, vector<128x128xf32>
    %cst = arith.constant dense<0.000000e+00> : vector<8x128xf32>
    %2 = tpu.matmul %0, %1, %cst {dimension_numbers = #tpu.dot_dimension_numbers<[1], [0], [0], [1], [0, 0, 1, 1], [], []>} : vector<8x128xf32>, vector<128x128xf32>, vector<8x128xf32> -> vector<8x128xf32>
    %c0_3 = arith.constant 0 : index
    %c0_4 = arith.constant 0 : index
    %3 = vector.load %arg3[%c0_3, %c0_4] : memref<1x128xf32, #tpu.memory_space<vmem>>, vector<1x128xf32>
    %4 = vector.broadcast %3 : vector<1x128xf32> to vector<8x128xf32>
    %5 = arith.addf %2, %4 : vector<8x128xf32>
    %c0_5 = arith.constant 0 : index
    %c0_6 = arith.constant 0 : index
    %6 = vector.load %arg4[%c0_5, %c0_6] : memref<8x128xf32, #tpu.memory_space<vmem>>, vector<8x128xf32>
    tpu.vector_store %arg4[%c0_5, %c0_6], %5 {strides = array<i32>} : memref<8x128xf32, #tpu.memory_space<vmem>>, vector<8x128xf32>,
    return
  }
  func.func @transform_0(%arg0: i32) -> (i32, i32) {
    %c0_i32 = arith.constant 0 : i32
    %c0_i32_0 = arith.constant 0 : i32
    return %arg0, %c0_i32 : i32, i32
  }
  func.func @transform_1(%arg0: i32) -> (i32, i32) {
    %c0_i32 = arith.constant 0 : i32
    %c0_i32_0 = arith.constant 0 : i32
    %c0_i32_1 = arith.constant 0 : i32
    return %c0_i32, %c0_i32_0 : i32, i32
  }
  func.func @transform_2(%arg0: i32) -> (i32, i32) {
    %c0_i32 = arith.constant 0 : i32
    %c0_i32_0 = arith.constant 0 : i32
    %c0_i32_1 = arith.constant 0 : i32
    return %c0_i32, %c0_i32_0 : i32, i32
  }
  func.func @transform_3(%arg0: i32) -> (i32, i32) {
    %c0_i32 = arith.constant 0 : i32
    %c0_i32_0 = arith.constant 0 : i32
    return %arg0, %c0_i32 : i32, i32
  }
}

</mosaic_0001>

<llo_original>
// kernel: mlp_mixer_forward.7
$region0: #{mlp_mixer_forward.7}
  #allocation0 [shape = 'u32[]', space=smem, size = 0x4, offset = 0x4, fixed_abs, tag = 'smem constant byte address 0x4 - core index']
  #allocation1 [shape = 'u32[144,128]{1,0:T(1,128)}', space=vmem, size = 0x12000, scoped, tag = 'internal scratch']
  %s0 = inlined_call_operand.hbm [shape: f32[32,128], index: 0, kind: input, shape index: {}]
  %s1 = inlined_call_operand.hbm [shape: f32[128,128], index: 1, kind: input, shape index: {}]
  %s2 = inlined_call_operand.hbm [shape: f32[1,128], index: 2, kind: input, shape index: {}]
  %s3 = inlined_call_operand.hbm [shape: f32[32,128], index: 3, kind: output, shape index: {}]
  %s4 = sld [smem:[#allocation0]]
  $region34: #{mlp_mixer_forward.7} parent=0
    _
  %s6 = ssub.s32 1, %s4
  %s7 = scalar_select 0, %s6, %s4
  $region1: #{mlp_mixer_forward.7} parent=0
    #allocation2 [shape = 'u8[16384]{0}', space=vmem, size = 0x4000, scoped, tag = 'input window, operand 0, single buffered']
    #allocation3 [shape = 's32[1]{0}', space=sflag, size = 0x4, scoped, tag = 'scoped memory for mlp_mixer_forward.7']
    #allocation4 [shape = 's32[1]{0}', space=sflag, size = 0x4, scoped, tag = 'scoped memory for mlp_mixer_forward.7']
    #allocation5 [shape = 'u8[65536]{0}', space=vmem, size = 0x10000, scoped, tag = 'input window, operand 1, single buffered']
    #allocation6 [shape = 's32[1]{0}', space=sflag, size = 0x4, scoped, tag = 'scoped memory for mlp_mixer_forward.7']
    #allocation7 [shape = 'u8[512]{0}', space=vmem, size = 0x400, scoped, tag = 'input window, operand 2, single buffered']
    #allocation8 [shape = 'u8[16384]{0}', space=vmem, size = 0x4000, scoped, tag = 'output window, operand 0, single buffered']
    %8 = vsyncpa [#allocation3], 0
    %9 = vsyncpa [#allocation6], 0
    %10 = vsyncpa [#allocation4], 0
    // Predicated region
    $region2: #{mlp_mixer_forward.7} parent=1 // pred_check
      _
    $region3: #{mlp_mixer_forward.7} parent=1 // pred_check_branch
      %12 = sbr.rel (0) target = $region5
    $region4: #{mlp_mixer_forward.7} parent=1 // pred_region
      %s14 = ssub.s32 512, 512
      %15 = vsyncadd [#allocation3], %s14
      %s16 = sshll.u32 [#allocation2], 4
      %s17 = int_to_ptr.vmem [resolvable:$true] %s16
      %22 = dma.hbm_to_vmem [thread:$0]  %s0, 512, %s17, [#allocation3], 128, 128, 8
    $region5: #{mlp_mixer_forward.7} parent=1 // pred_fallthru
      _
    // Predicated region
    $region6: #{mlp_mixer_forward.7} parent=1 // pred_check
      _
    $region7: #{mlp_mixer_forward.7} parent=1 // pred_check_branch
      %24 = sbr.rel (0) target = $region9
    $region8: #{mlp_mixer_forward.7} parent=1 // pred_region
      %s26 = ssub.s32 2048, 2048
      %27 = vsyncadd [#allocation6], %s26
      %s28 = sshll.u32 [#allocation5], 4
      %s29 = int_to_ptr.vmem [resolvable:$true] %s28
      %34 = dma.hbm_to_vmem [thread:$0]  %s1, 2048, %s29, [#allocation6], 128, 128, 8
    $region9: #{mlp_mixer_forward.7} parent=1 // pred_fallthru
      _
    // Predicated region
    $region10: #{mlp_mixer_forward.7} parent=1 // pred_check
      _
    $region11: #{mlp_mixer_forward.7} parent=1 // pred_check_branch
      %36 = sbr.rel (0) target = $region13
    $region12: #{mlp_mixer_forward.7} parent=1 // pred_region
      %s38 = ssub.s32 16, 16
      %39 = vsyncadd [#allocation6], %s38
      %s41 = sshll.u32 [#allocation7], 4
      %s42 = int_to_ptr.vmem [resolvable:$true] %s41
      %44 = dma.hbm_to_vmem [thread:$0]  %s2, 16, %s42, [#allocation6]
    $region13: #{mlp_mixer_forward.7} parent=1 // pred_fallthru
      _
    // Predicated region
    $region14: #{mlp_mixer_forward.7} parent=1 // pred_check
      _
    $region15: #{mlp_mixer_forward.7} parent=1 // pred_check_branch
      %46 = sbr.rel (0) target = $region17
    $region16: #{mlp_mixer_forward.7} parent=1 // pred_region
      %47 = dma.done [#allocation3], 512
    $region17: #{mlp_mixer_forward.7} parent=1 // pred_fallthru
      _
    // Predicated region
    $region18: #{mlp_mixer_forward.7} parent=1 // pred_check
      _
    $region19: #{mlp_mixer_forward.7} parent=1 // pred_check_branch
      %49 = sbr.rel (0) target = $region21
    $region20: #{mlp_mixer_forward.7} parent=1 // pred_region
      %50 = dma.done [#allocation6], 2048
    $region21: #{mlp_mixer_forward.7} parent=1 // pred_fallthru
      _
    // Predicated region
    $region22: #{mlp_mixer_forward.7} parent=1 // pred_check
      _
    $region23: #{mlp_mixer_forward.7} parent=1 // pred_check_branch
      %52 = sbr.rel (0) target = $region25
    $region24: #{mlp_mixer_forward.7} parent=1 // pred_region
      %53 = dma.done [#allocation6], 16
    $region25: #{mlp_mixer_forward.7} parent=1 // pred_fallthru
      _
    %v54 = vld [vmem:[#allocation2] sm:$0xff]
    %v55 = vld [vmem:[#allocation2 + $0x8] sm:$0xff]
    %v56 = vld [vmem:[#allocation2 + $0x10] sm:$0xff]
    %v57 = vld [vmem:[#allocation2 + $0x18] sm:$0xff]
    %v58 = vld [vmem:[#allocation5] sm:$0xff]
    %v59 = vld [vmem:[#allocation5 + $0x8] sm:$0xff]
    %v60 = vld [vmem:[#allocation5 + $0x10] sm:$0xff]
    %v61 = vld [vmem:[#allocation5 + $0x18] sm:$0xff]
    %v62 = vld [vmem:[#allocation5 + $0x20] sm:$0xff]
    %v63 = vld [vmem:[#allocation5 + $0x28] sm:$0xff]
    %v64 = vld [vmem:[#allocation5 + $0x30] sm:$0xff]
    %v65 = vld [vmem:[#allocation5 + $0x38] sm:$0xff]
    %v66 = vld [vmem:[#allocation5 + $0x40] sm:$0xff]
    %v67 = vld [vmem:[#allocation5 + $0x48] sm:$0xff]
    %v68 = vld [vmem:[#allocation5 + $0x50] sm:$0xff]
    %v69 = vld [vmem:[#allocation5 + $0x58] sm:$0xff]
    %v70 = vld [vmem:[#allocation5 + $0x60] sm:$0xff]
    %v71 = vld [vmem:[#allocation5 + $0x68] sm:$0xff]
    %v72 = vld [vmem:[#allocation5 + $0x70] sm:$0xff]
    %v73 = vld [vmem:[#allocation5 + $0x78] sm:$0xff]
    %v74 = vld [vmem:[#allocation7] sm:$0x1]
    %v76 = vlaneseq
    %v77 = vshrl.u32 %v76, 7
    %v78 = vsub.s32 0, %v77
    %v79 = vrot.slane %v74, %v78
    %81 = vmatprep.subr.mxu0 0.0
    %82 = vmatpush1.msra.mxu0 %v58
    %83 = vmatprep.subr.mxu0 0.0
    %84 = vmatpush1.msra.mxu0 %v59
    %85 = vmatprep.subr.mxu0 0.0
    %86 = vmatpush1.msra.mxu0 %v60
    %87 = vmatprep.subr.mxu0 0.0
    %88 = vmatpush1.msra.mxu0 %v61
    %89 = vmatprep.subr.mxu0 0.0
    %90 = vmatpush1.msra.mxu0 %v62
    %91 = vmatprep.subr.mxu0 0.0
    %92 = vmatpush1.msra.mxu0 %v63
    %93 = vmatprep.subr.mxu0 0.0
    %94 = vmatpush1.msra.mxu0 %v64
    %95 = vmatprep.subr.mxu0 0.0
    %96 = vmatpush1.msra.mxu0 %v65
    %97 = vmatprep.subr.mxu0 0.0
    %98 = vmatpush1.msra.mxu0 %v66
    %99 = vmatprep.subr.mxu0 0.0
    %100 = vmatpush1.msra.mxu0 %v67
    %101 = vmatprep.subr.mxu0 0.0
    %102 = vmatpush1.msra.mxu0 %v68
    %103 = vmatprep.subr.mxu0 0.0
    %104 = vmatpush1.msra.mxu0 %v69
    %105 = vmatprep.subr.mxu0 0.0
    %106 = vmatpush1.msra.mxu0 %v70
    %107 = vmatprep.subr.mxu0 0.0
    %108 = vmatpush1.msra.mxu0 %v71
    %109 = vmatprep.subr.mxu0 0.0
    %110 = vmatpush1.msra.mxu0 %v72
    %111 = vmatprep.subr.mxu0 0.0
    %112 = vmatpush1.msra.mxu0 %v73
    %113 = vmatprep.subr.mxu0 0.0
    %114 = vmatpush1.msra.mxu0 0.0
    %115 = vmatprep.subr.mxu0 0.0
    %116 = vmatpush1.msra.mxu0 0.0
    %117 = vmatprep.subr.mxu0 0.0
    %118 = vmatpush1.msra.mxu0 0.0
    %119 = vmatprep.subr.mxu0 0.0
    %120 = vmatpush1.msra.mxu0 0.0
    %121 = vmatprep.subr.mxu0 0.0
    %122 = vmatpush1.msra.mxu0 0.0
    %123 = vmatprep.subr.mxu0 0.0
    %124 = vmatpush1.msra.mxu0 0.0
    %125 = vmatprep.subr.mxu0 0.0
    %126 = vmatpush1.msra.mxu0 0.0
    %127 = vmatprep.subr.mxu0 0.0
    %128 = vmatpush1.msra.mxu0 0.0
    %129 = vmatprep.subr.mxu0 0.0
    %130 = vmatpush1.msra.mxu0 0.0
    %131 = vmatprep.subr.mxu0 0.0
    %132 = vmatpush1.msra.mxu0 0.0
    %133 = vmatprep.subr.mxu0 0.0
    %134 = vmatpush1.msra.mxu0 0.0
    %135 = vmatprep.subr.mxu0 0.0
    %136 = vmatpush1.msra.mxu0 0.0
    %137 = vmatprep.subr.mxu0 0.0
    %138 = vmatpush1.msra.mxu0 0.0
    %139 = vmatprep.subr.mxu0 0.0
    %140 = vmatpush1.msra.mxu0 0.0
    %141 = vmatprep.subr.mxu0 0.0
    %142 = vmatpush1.msra.mxu0 0.0
    %143 = vmatprep.subr.mxu0 0.0
    %144 = vmatpush1.msra.mxu0 0.0
    %145 = vmatprep.mubr.f32.mxu0 0.0
    %146 = vmatmul.mubr.f32.gmra.mrb[0].mxu0 %v54
    %v147 = vpop.f32.mrb[0].mxu0
    %v148 = vadd.f32 %v79, %v147
    %v149 = vpop.f32.mrb[0].mxu0
    %150 = vmatprep.mubr.f32.mxu0 0.0
    %151 = vmatmul.mubr.f32.gmra.mrb[0].mxu0 %v55
    %v152 = vpop.f32.mrb[0].mxu0
    %v153 = vadd.f32 %v79, %v152
    %v154 = vpop.f32.mrb[0].mxu0
    %155 = vmatprep.mubr.f32.mxu0 0.0
    %156 = vmatmul.mubr.f32.gmra.mrb[0].mxu0 %v56
    %v157 = vpop.f32.mrb[0].mxu0
    %v158 = vadd.f32 %v79, %v157
    %v159 = vpop.f32.mrb[0].mxu0
    %160 = vmatprep.mubr.f32.mxu0 0.0
    %161 = vmatmul.mubr.f32.gmra.mrb[0].mxu0 %v57
    %v162 = vpop.f32.mrb[0].mxu0
    %v163 = vadd.f32 %v79, %v162
    %v164 = vpop.f32.mrb[0].mxu0
    %165 = vdwg.mxu0
    %166 = vst [vmem:[#allocation8] sm:$0xff] %v148
    %167 = vst [vmem:[#allocation8 + $0x8] sm:$0xff] %v153
    %168 = vst [vmem:[#allocation8 + $0x10] sm:$0xff] %v158
    %169 = vst [vmem:[#allocation8 + $0x18] sm:$0xff] %v163
    // Predicated region
    $region26: #{mlp_mixer_forward.7} parent=1 // pred_check
      _
    $region27: #{mlp_mixer_forward.7} parent=1 // pred_check_branch
      %171 = sbr.rel (0) target = $region29
    $region28: #{mlp_mixer_forward.7} parent=1 // pred_region
      %s173 = ssub.s32 512, 512
      %174 = vsyncadd [#allocation4], %s173
      %s175 = sshll.u32 [#allocation8], 4
      %s176 = int_to_ptr.vmem [resolvable:$true] %s175
      %181 = dma.vmem_to_hbm [thread:$0]  %s176, 512, %s3, [#allocation4], 128, 128, 8
    $region29: #{mlp_mixer_forward.7} parent=1 // pred_fallthru
      _
    // Predicated region
    $region30: #{mlp_mixer_forward.7} parent=1 // pred_check
      _
    $region31: #{mlp_mixer_forward.7} parent=1 // pred_check_branch
      %183 = sbr.rel (0) target = $region33
    $region32: #{mlp_mixer_forward.7} parent=1 // pred_region
      %184 = dma.done [#allocation4], 512
    $region33: #{mlp_mixer_forward.7} parent=1 // pred_fallthru
      _
    %185 = vsyncpa [#allocation3], 1
    %186 = vsyncpa [#allocation6], 1
    %187 = vsyncpa [#allocation4], 1

// kernel: mlp_mixer_forward.8
$region0: #{mlp_mixer_forward.8}
  #allocation0 [shape = 'u32[]', space=smem, size = 0x4, offset = 0x4, fixed_abs, tag = 'smem constant byte address 0x4 - core index']
  #allocation1 [shape = 'u32[144,128]{1,0:T(1,128)}', space=vmem, size = 0x12000, scoped, tag = 'internal scratch']
  %s0 = inlined_call_operand.hbm [shape: f32[2,16,32], index: 0, kind: input, shape index: {}]
  %s1 = inlined_call_operand.hbm [shape: f32[1,32], index: 1, kind: input, shape index: {}]
  %s2 = inlined_call_operand.hbm [shape: f32[1,32], index: 2, kind: input, shape index: {}]
  %s3 = inlined_call_operand.hbm [shape: f32[16,16], index: 3, kind: input, shape index: {}]
  %s4 = inlined_call_operand.hbm [shape: f32[1,16], index: 4, kind: input, shape index: {}]
  %s5 = inlined_call_operand.hbm [shape: f32[16,16], index: 5, kind: input, shape index: {}]
  %s6 = inlined_call_operand.hbm [shape: f32[1,16], index: 6, kind: input, shape index: {}]
  %s7 = inlined_call_operand.hbm [shape: f32[2,16,32], index: 7, kind: output, shape index: {}]
  %s8 = sld [smem:[#allocation0]]
  $region89: #{mlp_mixer_forward.8} parent=0
    _
  %s10 = ssub.s32 1, %s8
  %s11 = scalar_select 0, %s10, %s8
  $region1: #{mlp_mixer_forward.8} parent=0
    #allocation2 [shape = 'u8[16384]{0}', space=vmem, size = 0x4000, scoped, tag = 'input window, operand 0']
    #allocation3 [shape = 's32[2]{0}', space=sflag, size = 0x8, scoped, tag = 'scoped memory for mlp_mixer_forward.8']
    #allocation4 [shape = 's32[2]{0}', space=sflag, size = 0x8, scoped, tag = 'scoped memory for mlp_mixer_forward.8']
    #allocation5 [shape = 'u8[512]{0}', space=vmem, size = 0x400, scoped, tag = 'input window, operand 1, single buffered']
    #allocation6 [shape = 's32[1]{0}', space=sflag, size = 0x4, scoped, tag = 'scoped memory for mlp_mixer_forward.8']
    #allocation7 [shape = 'u8[512]{0}', space=vmem, size = 0x400, scoped, tag = 'input window, operand 2, single buffered']
    #allocation8 [shape = 'u8[8192]{0}', space=vmem, size = 0x2000, scoped, tag = 'input window, operand 3, single buffered']
    #allocation9 [shape = 's32[1]{0}', space=sflag, size = 0x4, scoped, tag = 'scoped memory for mlp_mixer_forward.8']
    #allocation10 [shape = 'u8[512]{0}', space=vmem, size = 0x400, scoped, tag = 'input window, operand 4, single buffered']
    #allocation11 [shape = 'u8[8192]{0}', space=vmem, size = 0x2000, scoped, tag = 'input window, operand 5, single buffered']
    #allocation12 [shape = 's32[1]{0}', space=sflag, size = 0x4, scoped, tag = 'scoped memory for mlp_mixer_forward.8']
    #allocation13 [shape = 'u8[512]{0}', space=vmem, size = 0x400, scoped, tag = 'input window, operand 6, single buffered']
    #allocation14 [shape = 'u8[16384]{0}', space=vmem, size = 0x4000, scoped, tag = 'output window, operand 0']
    %12 = vsyncpa [#allocation3], 0
    %s13 = scalar_lea.sflag [#allocation3], 1
    %14 = vsyncpa %s13, 0
    %15 = vsyncpa [#allocation6], 0
    %16 = vsyncpa [#allocation9], 0
    %17 = vsyncpa [#allocation12], 0
    %18 = vsyncpa [#allocation4], 0
    %s19 = scalar_lea.sflag [#allocation4], 1
    %20 = vsyncpa %s19, 0
    loop: start=0, step=1, limit=4
    $region2: #{mlp_mixer_forward.8} parent=1 // loop_pre_header
      _
    $region3: #{mlp_mixer_forward.8} parent=1 // loop_header
      %s22 = sphi 0, %s26
      %p23 = scmp.ge.s32.totalorder %s22, 4
      %s32 = sphi 0, %s34
      %s35 = sphi 0, %s32
      %s36 = sphi 0, %s35
      %s52 = sphi 0, %s36
      %s56 = sphi 0, %s56
      %s58 = sphi 0, %s56
      %s59 = sphi 0, %s58
      %s73 = sphi 0, %s59
      %s77 = sphi 0, %s77
      %s79 = sphi 0, %s77
      %s80 = sphi 0, %s79
      %s94 = sphi 0, %s80
      %s98 = sphi 0, %s98
      %s100 = sphi 0, %s98
      %s101 = sphi 0, %s100
      %s115 = sphi 0, %s101
      %s119 = sphi 0, %s119
      %s121 = sphi 0, %s119
      %s122 = sphi 0, %s121
      %s136 = sphi 0, %s122
      %s140 = sphi 0, %s140
      %s142 = sphi 0, %s140
      %s143 = sphi 0, %s142
      %s157 = sphi 0, %s143
      %s161 = sphi 0, %s161
      %s163 = sphi 0, %s161
      %s164 = sphi 0, %s163
      %s178 = sphi 0, %s164
      %s184 = sphi 0, %s186
      %s187 = sphi 0, %s184
      %s188 = sphi 0, %s187
      %s204 = sphi 0, %s188
    $region4: #{mlp_mixer_forward.8} parent=1 // loop_header_branch
      %25 = sbr.rel (%p23) target = $region8
    $region5: #{mlp_mixer_forward.8} parent=1 // loop_body
      %s27 = ssub.s32 %s22, 1
      %s28 = ssub.s32 %s22, 2
      %s29 = sadd.s32 %s22, 1
      %s30 = ssub.s32 %s22, %s29
      %p31 = scmp.eq.s32.totalorder %s30, 0
      %s33 = sadd.s32 %s32, 1
      %s34 = scalar_select %p31, %s32, %s33
      %p37 = pneg %p31
      %p38 = scmp.eq.s32.totalorder %s22, 1
      %p39 = por %p37, %p38
      %p40 = scmp.ne.s32.totalorder %s32, %s35
      %p41 = scmp.eq.s32.totalorder %s22, 0
      %p42 = por %p40, %p41
      %p43 = scmp.ne.s32.totalorder %s32, %s35
      %p44 = scmp.eq.s32.totalorder %s27, 1
      %p45 = por %p43, %p44
      %p46 = scmp.ne.s32.totalorder %s35, %s36
      %p47 = scmp.eq.s32.totalorder %s27, 0
      %p48 = por %p46, %p47
      %p49 = scmp.ne.s32.totalorder %s35, %s36
      %p50 = scmp.eq.s32.totalorder %s28, 1
      %p51 = por %p49, %p50
      %p53 = scmp.ne.s32.totalorder %s36, %s52
      %p54 = scmp.eq.s32.totalorder %s28, 0
      %p55 = por %p53, %p54
      %s57 = sadd.s32 %s56, 1
      %p60 = scmp.eq.s32.totalorder %s22, 1
      %p61 = scmp.ne.s32.totalorder %s56, %s58
      %p62 = scmp.eq.s32.totalorder %s22, 0
      %p63 = por %p61, %p62
      %p64 = scmp.ne.s32.totalorder %s56, %s58
      %p65 = scmp.eq.s32.totalorder %s27, 1
      %p66 = por %p64, %p65
      %p67 = scmp.ne.s32.totalorder %s58, %s59
      %p68 = scmp.eq.s32.totalorder %s27, 0
      %p69 = por %p67, %p68
      %p70 = scmp.ne.s32.totalorder %s58, %s59
      %p71 = scmp.eq.s32.totalorder %s28, 1
      %p72 = por %p70, %p71
      %p74 = scmp.ne.s32.totalorder %s59, %s73
      %p75 = scmp.eq.s32.totalorder %s28, 0
      %p76 = por %p74, %p75
      %s78 = sadd.s32 %s77, 1
      %p81 = scmp.eq.s32.totalorder %s22, 1
      %p82 = scmp.ne.s32.totalorder %s77, %s79
      %p83 = scmp.eq.s32.totalorder %s22, 0
      %p84 = por %p82, %p83
      %p85 = scmp.ne.s32.totalorder %s77, %s79
      %p86 = scmp.eq.s32.totalorder %s27, 1
      %p87 = por %p85, %p86
      %p88 = scmp.ne.s32.totalorder %s79, %s80
      %p89 = scmp.eq.s32.totalorder %s27, 0
      %p90 = por %p88, %p89
      %p91 = scmp.ne.s32.totalorder %s79, %s80
      %p92 = scmp.eq.s32.totalorder %s28, 1
      %p93 = por %p91, %p92
      %p95 = scmp.ne.s32.totalorder %s80, %s94
      %p96 = scmp.eq.s32.totalorder %s28, 0
      %p97 = por %p95, %p96
      %s99 = sadd.s32 %s98, 1
      %p102 = scmp.eq.s32.totalorder %s22, 1
      %p103 = scmp.ne.s32.totalorder %s98, %s100
      %p104 = scmp.eq.s32.totalorder %s22, 0
      %p105 = por %p103, %p104
      %p106 = scmp.ne.s32.totalorder %s98, %s100
      %p107 = scmp.eq.s32.totalorder %s27, 1
      %p108 = por %p106, %p107
      %p109 = scmp.ne.s32.totalorder %s100, %s101
      %p110 = scmp.eq.s32.totalorder %s27, 0
      %p111 = por %p109, %p110
      %p112 = scmp.ne.s32.totalorder %s100, %s101
      %p113 = scmp.eq.s32.totalorder %s28, 1
      %p114 = por %p112, %p113
      %p116 = scmp.ne.s32.totalorder %s101, %s115
      %p117 = scmp.eq.s32.totalorder %s28, 0
      %p118 = por %p116, %p117
      %s120 = sadd.s32 %s119, 1
      %p123 = scmp.eq.s32.totalorder %s22, 1
      %p124 = scmp.ne.s32.totalorder %s119, %s121
      %p125 = scmp.eq.s32.totalorder %s22, 0
      %p126 = por %p124, %p125
      %p127 = scmp.ne.s32.totalorder %s119, %s121
      %p128 = scmp.eq.s32.totalorder %s27, 1
      %p129 = por %p127, %p128
      %p130 = scmp.ne.s32.totalorder %s121, %s122
      %p131 = scmp.eq.s32.totalorder %s27, 0
      %p132 = por %p130, %p131
      %p133 = scmp.ne.s32.totalorder %s121, %s122
      %p134 = scmp.eq.s32.totalorder %s28, 1
      %p135 = por %p133, %p134
      %p137 = scmp.ne.s32.totalorder %s122, %s136
      %p138 = scmp.eq.s32.totalorder %s28, 0
      %p139 = por %p137, %p138
      %s141 = sadd.s32 %s140, 1
      %p144 = scmp.eq.s32.totalorder %s22, 1
      %p145 = scmp.ne.s32.totalorder %s140, %s142
      %p146 = scmp.eq.s32.totalorder %s22, 0
      %p147 = por %p145, %p146
      %p148 = scmp.ne.s32.totalorder %s140, %s142
      %p149 = scmp.eq.s32.totalorder %s27, 1
      %p150 = por %p148, %p149
      %p151 = scmp.ne.s32.totalorder %s142, %s143
      %p152 = scmp.eq.s32.totalorder %s27, 0
      %p153 = por %p151, %p152
      %p154 = scmp.ne.s32.totalorder %s142, %s143
      %p155 = scmp.eq.s32.totalorder %s28, 1
      %p156 = por %p154, %p155
      %p158 = scmp.ne.s32.totalorder %s143, %s157
      %p159 = scmp.eq.s32.totalorder %s28, 0
      %p160 = por %p158, %p159
      %s162 = sadd.s32 %s161, 1
      %p165 = scmp.eq.s32.totalorder %s22, 1
      %p166 = scmp.ne.s32.totalorder %s161, %s163
      %p167 = scmp.eq.s32.totalorder %s22, 0
      %p168 = por %p166, %p167
      %p169 = scmp.ne.s32.totalorder %s161, %s163
      %p170 = scmp.eq.s32.totalorder %s27, 1
      %p171 = por %p169, %p170
      %p172 = scmp.ne.s32.totalorder %s163, %s164
      %p173 = scmp.eq.s32.totalorder %s27, 0
      %p174 = por %p172, %p173
      %p175 = scmp.ne.s32.totalorder %s163, %s164
      %p176 = scmp.eq.s32.totalorder %s28, 1
      %p177 = por %p175, %p176
      %p179 = scmp.ne.s32.totalorder %s164, %s178
      %p180 = scmp.eq.s32.totalorder %s28, 0
      %p181 = por %p179, %p180
      %s182 = ssub.s32 %s22, %s29
      %p183 = scmp.eq.s32.totalorder %s182, 0
      %s185 = sadd.s32 %s184, 1
      %s186 = scalar_select %p183, %s184, %s185
      %p189 = pneg %p183
      %p190 = scmp.eq.s32.totalorder %s22, 1
      %p191 = por %p189, %p190
      %p192 = scmp.ne.s32.totalorder %s184, %s187
      %p193 = scmp.eq.s32.totalorder %s22, 0
      %p194 = por %p192, %p193
      %p195 = scmp.ne.s32.totalorder %s184, %s187
      %p196 = scmp.eq.s32.totalorder %s27, 1
      %p197 = por %p195, %p196
      %p198 = scmp.ne.s32.totalorder %s187, %s188
      %p199 = scmp.eq.s32.totalorder %s27, 0
      %p200 = por %p198, %p199
      %p201 = scmp.ne.s32.totalorder %s187, %s188
      %p202 = scmp.eq.s32.totalorder %s28, 1
      %p203 = por %p201, %p202
      %p205 = scmp.ne.s32.totalorder %s188, %s204
      %p206 = scmp.eq.s32.totalorder %s28, 0
      %p207 = por %p205, %p206
      %p208 = scmp.le.s32.totalorder 1, %s22
      %p209 = scmp.lt.s32.totalorder %s22, 3
      %p210 = pnand %p208, %p209
      %p211 = pneg %p210
      // Predicated region
      $region9: #{mlp_mixer_forward.8} parent=5 // pred_check
        _
      $region10: #{mlp_mixer_forward.8} parent=5 // pred_check_branch
        %213 = sbr.rel (%p210) target = $region12
      $region11: #{mlp_mixer_forward.8} parent=5 // pred_region
        %s214 = ssub.s32 %s22, 1
        // Predicated region
        $region13: #{mlp_mixer_forward.8} parent=11 // pred_check
          %p215 = pneg %p69
        $region14: #{mlp_mixer_forward.8} parent=11 // pred_check_branch
          %217 = sbr.rel (%p215) target = $region16
        $region15: #{mlp_mixer_forward.8} parent=11 // pred_region
          %s219 = ssub.s32 16, 16
          %220 = vsyncadd [#allocation6], %s219
          %s222 = sshll.u32 [#allocation5], 4
          %s223 = int_to_ptr.vmem [resolvable:$true] %s222
          %225 = dma.hbm_to_vmem [thread:$0]  %s1, 16, %s223, [#allocation6]
        $region16: #{mlp_mixer_forward.8} parent=11 // pred_fallthru
          _
        // Predicated region
        $region17: #{mlp_mixer_forward.8} parent=11 // pred_check
          %p226 = pneg %p90
        $region18: #{mlp_mixer_forward.8} parent=11 // pred_check_branch
          %228 = sbr.rel (%p226) target = $region20
        $region19: #{mlp_mixer_forward.8} parent=11 // pred_region
          %s230 = ssub.s32 16, 16
          %231 = vsyncadd [#allocation6], %s230
          %s233 = sshll.u32 [#allocation7], 4
          %s234 = int_to_ptr.vmem [resolvable:$true] %s233
          %236 = dma.hbm_to_vmem [thread:$0]  %s2, 16, %s234, [#allocation6]
        $region20: #{mlp_mixer_forward.8} parent=11 // pred_fallthru
          _
        // Predicated region
        $region21: #{mlp_mixer_forward.8} parent=11 // pred_check
          %p237 = pneg %p111
        $region22: #{mlp_mixer_forward.8} parent=11 // pred_check_branch
          %239 = sbr.rel (%p237) target = $region24
        $region23: #{mlp_mixer_forward.8} parent=11 // pred_region
          %s241 = ssub.s32 256, 256
          %242 = vsyncadd [#allocation9], %s241
          %s243 = sshll.u32 [#allocation8], 4
          %s244 = int_to_ptr.vmem [resolvable:$true] %s243
          %249 = dma.hbm_to_vmem [thread:$0]  %s3, 256, %s244, [#allocation9], 128, 128, 8
        $region24: #{mlp_mixer_forward.8} parent=11 // pred_fallthru
          _
        // Predicated region
        $region25: #{mlp_mixer_forward.8} parent=11 // pred_check
          %p250 = pneg %p132
        $region26: #{mlp_mixer_forward.8} parent=11 // pred_check_branch
          %252 = sbr.rel (%p250) target = $region28
        $region27: #{mlp_mixer_forward.8} parent=11 // pred_region
          %s254 = ssub.s32 16, 16
          %255 = vsyncadd [#allocation9], %s254
          %s257 = sshll.u32 [#allocation10], 4
          %s258 = int_to_ptr.vmem [resolvable:$true] %s257
          %260 = dma.hbm_to_vmem [thread:$0]  %s4, 16, %s258, [#allocation9]
        $region28: #{mlp_mixer_forward.8} parent=11 // pred_fallthru
          _
        // Predicated region
        $region29: #{mlp_mixer_forward.8} parent=11 // pred_check
          %p261 = pneg %p153
        $region30: #{mlp_mixer_forward.8} parent=11 // pred_check_branch
          %263 = sbr.rel (%p261) target = $region32
        $region31: #{mlp_mixer_forward.8} parent=11 // pred_region
          %s265 = ssub.s32 256, 256
          %266 = vsyncadd [#allocation12], %s265
          %s267 = sshll.u32 [#allocation11], 4
          %s268 = int_to_ptr.vmem [resolvable:$true] %s267
          %273 = dma.hbm_to_vmem [thread:$0]  %s5, 256, %s268, [#allocation12], 128, 128, 8
        $region32: #{mlp_mixer_forward.8} parent=11 // pred_fallthru
          _
        // Predicated region
        $region33: #{mlp_mixer_forward.8} parent=11 // pred_check
          %p274 = pneg %p174
        $region34: #{mlp_mixer_forward.8} parent=11 // pred_check_branch
          %276 = sbr.rel (%p274) target = $region36
        $region35: #{mlp_mixer_forward.8} parent=11 // pred_region
          %s278 = ssub.s32 16, 16
          %279 = vsyncadd [#allocation12], %s278
          %s281 = sshll.u32 [#allocation13], 4
          %s282 = int_to_ptr.vmem [resolvable:$true] %s281
          %284 = dma.hbm_to_vmem [thread:$0]  %s6, 16, %s282, [#allocation12]
        $region36: #{mlp_mixer_forward.8} parent=11 // pred_fallthru
          _
      $region12: #{mlp_mixer_forward.8} parent=5 // pred_fallthru
        _
      %p285 = scmp.lt.s32.totalorder %s22, 2
      // Predicated region
      $region37: #{mlp_mixer_forward.8} parent=5 // pred_check
        %p286 = pneg %p285
      $region38: #{mlp_mixer_forward.8} parent=5 // pred_check_branch
        %288 = sbr.rel (%p286) target = $region40
      $region39: #{mlp_mixer_forward.8} parent=5 // pred_region
        // Predicated region
        $region41: #{mlp_mixer_forward.8} parent=39 // pred_check
          %p289 = pneg %p42
        $region42: #{mlp_mixer_forward.8} parent=39 // pred_check_branch
          %291 = sbr.rel (%p289) target = $region44
        $region43: #{mlp_mixer_forward.8} parent=39 // pred_region
          %s292 = sand.u32 %s32, 1
          %s293 = scalar_lea.sflag [#allocation3], %s292
          %s294 = sand.u32 %s32, 1
          %s295 = smul.addr %s294, 16
          %s296 = scalar_lea.vmem [#allocation2], %s295
          %s298 = ssub.s32 256, 256
          %299 = vsyncadd %s293, %s298
          %s300 = smul.addr %s22, 2
          %s301 = smul.addr %s300, 128
          %s302 = scalar_lea.hbm %s0, %s301
          %s303 = sshll.u32 %s296, 4
          %s304 = int_to_ptr.vmem [resolvable:$true] %s303
          %309 = dma.hbm_to_vmem [thread:$0]  %s302, 256, %s304, %s293, 128, 128, 8
        $region44: #{mlp_mixer_forward.8} parent=39 // pred_fallthru
          _
      $region40: #{mlp_mixer_forward.8} parent=5 // pred_fallthru
        _
      %p310 = scmp.le.s32.totalorder 1, %s22
      %p311 = scmp.lt.s32.totalorder %s22, 3
      %p312 = pnand %p310, %p311
      %p313 = pneg %p312
      // Predicated region
      $region45: #{mlp_mixer_forward.8} parent=5 // pred_check
        _
      $region46: #{mlp_mixer_forward.8} parent=5 // pred_check_branch
        %315 = sbr.rel (%p312) target = $region48
      $region47: #{mlp_mixer_forward.8} parent=5 // pred_region
        %s316 = ssub.s32 %s22, 1
        %s317 = sand.u32 %s35, 1
        %s318 = scalar_lea.sflag [#allocation3], %s317
        %s319 = sand.u32 %s35, 1
        %s320 = smul.addr %s319, 16
        %s321 = scalar_lea.vmem [#allocation2], %s320
        // Predicated region
        $region49: #{mlp_mixer_forward.8} parent=47 // pred_check
          %p322 = pneg %p48
        $region50: #{mlp_mixer_forward.8} parent=47 // pred_check_branch
          %324 = sbr.rel (%p322) target = $region52
        $region51: #{mlp_mixer_forward.8} parent=47 // pred_region
          %325 = dma.done %s318, 256
        $region52: #{mlp_mixer_forward.8} parent=47 // pred_fallthru
          _
        // Predicated region
        $region53: #{mlp_mixer_forward.8} parent=47 // pred_check
          %p326 = pneg %p69
        $region54: #{mlp_mixer_forward.8} parent=47 // pred_check_branch
          %328 = sbr.rel (%p326) target = $region56
        $region55: #{mlp_mixer_forward.8} parent=47 // pred_region
          %329 = dma.done [#allocation6], 16
        $region56: #{mlp_mixer_forward.8} parent=47 // pred_fallthru
          _
        // Predicated region
        $region57: #{mlp_mixer_forward.8} parent=47 // pred_check
          %p330 = pneg %p90
        $region58: #{mlp_mixer_forward.8} parent=47 // pred_check_branch
          %332 = sbr.rel (%p330) target = $region60
        $region59: #{mlp_mixer_forward.8} parent=47 // pred_region
          %333 = dma.done [#allocation6], 16
        $region60: #{mlp_mixer_forward.8} parent=47 // pred_fallthru
          _
        // Predicated region
        $region61: #{mlp_mixer_forward.8} parent=47 // pred_check
          %p334 = pneg %p111
        $region62: #{mlp_mixer_forward.8} parent=47 // pred_check_branch
          %336 = sbr.rel (%p334) target = $region64
        $region63: #{mlp_mixer_forward.8} parent=47 // pred_region
          %337 = dma.done [#allocation9], 256
        $region64: #{mlp_mixer_forward.8} parent=47 // pred_fallthru
          _
        // Predicated region
        $region65: #{mlp_mixer_forward.8} parent=47 // pred_check
          %p338 = pneg %p132
        $region66: #{mlp_mixer_forward.8} parent=47 // pred_check_branch
          %340 = sbr.rel (%p338) target = $region68
        $region67: #{mlp_mixer_forward.8} parent=47 // pred_region
          %341 = dma.done [#allocation9], 16
        $region68: #{mlp_mixer_forward.8} parent=47 // pred_fallthru
          _
        // Predicated region
        $region69: #{mlp_mixer_forward.8} parent=47 // pred_check
          %p342 = pneg %p153
        $region70: #{mlp_mixer_forward.8} parent=47 // pred_check_branch
          %344 = sbr.rel (%p342) target = $region72
        $region71: #{mlp_mixer_forward.8} parent=47 // pred_region
          %345 = dma.done [#allocation12], 256
        $region72: #{mlp_mixer_forward.8} parent=47 // pred_fallthru
          _
        // Predicated region
        $region73: #{mlp_mixer_forward.8} parent=47 // pred_check
          %p346 = pneg %p174
        $region74: #{mlp_mixer_forward.8} parent=47 // pred_check_branch
          %348 = sbr.rel (%p346) target = $region76
        $region75: #{mlp_mixer_forward.8} parent=47 // pred_region
          %349 = dma.done [#allocation12], 16
        $region76: #{mlp_mixer_forward.8} parent=47 // pred_fallthru
          _
        %s350 = sand.u32 %s35, 1
        %s351 = scalar_lea.sflag [#allocation3], %s350
        %s352 = sand.u32 %s35, 1
        %s353 = smul.addr %s352, 16
        %s354 = scalar_lea.vmem [#allocation2], %s353
        %p355 = pneg %p48
        %p356 = pneg %p45
        %p357 = pneg %p69
        %p358 = pneg %p66
        %p359 = pneg %p90
        %p360 = pneg %p87
        %p361 = pneg %p111
        %p362 = pneg %p108
        %p363 = pneg %p132
        %p364 = pneg %p129
        %p365 = pneg %p153
        %p366 = pneg %p150
        %p367 = pneg %p174
        %p368 = pneg %p171
        %p369 = pneg %p200
        %p370 = pneg %p197
        %s371 = sand.u32 %s187, 1
        %s372 = scalar_lea.sflag [#allocation4], %s371
        %s373 = sand.u32 %s187, 1
        %s374 = smul.addr %s373, 16
        %s375 = scalar_lea.vmem [#allocation14], %s374
        %v376 = vld [vmem:[%s321] sm:$0xff]
        %v377 = vld [vmem:[%s321 + $0x8] sm:$0xff]
        %vm378 = vcmask 261120
        %v379 = vsel %vm378, %v376, 0.0
        %380 = vadd.xlane.f32.xlu0 %v379
        %v381 = vpop.xlane.xlu0 %380
        %v382 = vsel %vm378, %v377, 0.0
        %383 = vadd.xlane.f32.xlu0 %v382
        %v384 = vpop.xlane.xlu0 %383
        %v385 = vrcp.pop 32.0
        %v386 = vmul.f32 %v381, %v385
        %v387 = vmul.f32 %v384, %v385
        %v388 = vsub.f32 %v376, %v386
        %v389 = vsub.f32 %v377, %v387
        %v390 = vmul.f32 %v388, %v388
        %v391 = vmul.f32 %v389, %v389
        %v392 = vsel %vm378, %v390, 0.0
        %393 = vadd.xlane.f32.xlu0 %v392
        %v394 = vpop.xlane.xlu0 %393
        %v395 = vsel %vm378, %v391, 0.0
        %396 = vadd.xlane.f32.xlu0 %v395
        %v397 = vpop.xlane.xlu0 %396
        %v398 = vmul.f32 %v394, %v385
        %v399 = vmul.f32 %v397, %v385
        %v400 = vadd.f32 %v398, 1e-05
        %v401 = vadd.f32 %v399, 1e-05
        %v402 = vrsqrt.pop %v400
        %v403 = vrsqrt.pop %v401
        %v404 = vmul.f32 %v388, %v402
        %v405 = vmul.f32 %v389, %v403
        %v406 = vld [vmem:[#allocation5] sm:$0x1]
        %v408 = vlaneseq
        %v409 = vshrl.u32 %v408, 7
        %v410 = vsub.s32 0, %v409
        %v411 = vrot.slane %v406, %v410
        %v413 = vmul.f32 %v404, %v411
        %v414 = vmul.f32 %v405, %v411
        %v415 = vld [vmem:[#allocation7] sm:$0x1]
        %v417 = vlaneseq
        %v418 = vshrl.u32 %v417, 7
        %v419 = vsub.s32 0, %v418
        %v420 = vrot.slane %v415, %v419
        %v422 = vadd.f32 %v413, %v420
        %v423 = vadd.f32 %v414, %v420
        %424 = vxpose.xlu0.b32.start [1/16] %v422, 128
        %425 = vxpose.xlu0.b32.cont [2/16] %v423, 128
        %426 = vxpose.xlu0.b32.cont [3/16] 0.0, 128
        %427 = vxpose.xlu0.b32.cont [4/16] 0.0, 128
        %428 = vxpose.xlu0.b32.cont [5/16] 0.0, 128
        %429 = vxpose.xlu0.b32.cont [6/16] 0.0, 128
        %430 = vxpose.xlu0.b32.cont [7/16] 0.0, 128
        %431 = vxpose.xlu0.b32.cont [8/16] 0.0, 128
        %432 = vxpose.xlu0.b32.cont [9/16] 0.0, 128
        %433 = vxpose.xlu0.b32.cont [10/16] 0.0, 128
        %434 = vxpose.xlu0.b32.cont [11/16] 0.0, 128
        %435 = vxpose.xlu0.b32.cont [12/16] 0.0, 128
        %436 = vxpose.xlu0.b32.cont [13/16] 0.0, 128
        %437 = vxpose.xlu0.b32.cont [14/16] 0.0, 128
        %438 = vxpose.xlu0.b32.cont [15/16] 0.0, 128
        %439 = vxpose.xlu0.b32.end [16/16] 0.0, 128
        %v440 = vpop.trf.xlu0
        %v441 = vpop.trf.xlu0
        %v442 = vpop.trf.xlu0
        %v443 = vpop.trf.xlu0
        %v444 = vpop.trf.xlu0
        %v445 = vpop.trf.xlu0
        %v446 = vpop.trf.xlu0
        %v447 = vpop.trf.xlu0
        %v448 = vpop.trf.xlu0
        %v449 = vpop.trf.xlu0
        %v450 = vpop.trf.xlu0
        %v451 = vpop.trf.xlu0
        %v452 = vpop.trf.xlu0
        %v453 = vpop.trf.xlu0
        %v454 = vpop.trf.xlu0
        %v455 = vpop.trf.xlu0
        %v456 = vld [vmem:[#allocation8] sm:$0xff]
        %v457 = vld [vmem:[#allocation8 + $0x8] sm:$0xff]
        %v458 = vld [vmem:[#allocation10] sm:$0x1]
        %v460 = vlaneseq
        %v461 = vshrl.u32 %v460, 7
        %v462 = vsub.s32 0, %v461
        %v463 = vrot.slane %v458, %v462
        %vm465 = vcmask 130048
        %v467 = vsel %vm465, %v440, 0
        %v470 = vsel %vm465, %v441, 0
        %v473 = vsel %vm465, %v442, 0
        %v476 = vsel %vm465, %v443, 0
        %478 = vmatprep.subr.mxu0 0.0
        %479 = vmatpush1.msra.mxu0 %v456
        %480 = vmatprep.subr.mxu0 0.0
        %481 = vmatpush1.msra.mxu0 %v457
        %482 = vmatprep.subr.mxu0 0.0
        %483 = vmatpush1.msra.mxu0 0.0
        %484 = vmatprep.subr.mxu0 0.0
        %485 = vmatpush1.msra.mxu0 0.0
        %486 = vmatprep.subr.mxu0 0.0
        %487 = vmatpush1.msra.mxu0 0.0
        %488 = vmatprep.subr.mxu0 0.0
        %489 = vmatpush1.msra.mxu0 0.0
        %490 = vmatprep.subr.mxu0 0.0
        %491 = vmatpush1.msra.mxu0 0.0
        %492 = vmatprep.subr.mxu0 0.0
        %493 = vmatpush1.msra.mxu0 0.0
        %494 = vmatprep.subr.mxu0 0.0
        %495 = vmatpush1.msra.mxu0 0.0
        %496 = vmatprep.subr.mxu0 0.0
        %497 = vmatpush1.msra.mxu0 0.0
        %498 = vmatprep.subr.mxu0 0.0
        %499 = vmatpush1.msra.mxu0 0.0
        %500 = vmatprep.subr.mxu0 0.0
        %501 = vmatpush1.msra.mxu0 0.0
        %502 = vmatprep.subr.mxu0 0.0
        %503 = vmatpush1.msra.mxu0 0.0
        %504 = vmatprep.subr.mxu0 0.0
        %505 = vmatpush1.msra.mxu0 0.0
        %506 = vmatprep.subr.mxu0 0.0
        %507 = vmatpush1.msra.mxu0 0.0
        %508 = vmatprep.subr.mxu0 0.0
        %509 = vmatpush1.msra.mxu0 0.0
        %510 = vmatprep.subr.mxu0 0.0
        %511 = vmatpush1.msra.mxu0 0.0
        %512 = vmatprep.subr.mxu0 0.0
        %513 = vmatpush1.msra.mxu0 0.0
        %514 = vmatprep.subr.mxu0 0.0
        %515 = vmatpush1.msra.mxu0 0.0
        %516 = vmatprep.subr.mxu0 0.0
        %517 = vmatpush1.msra.mxu0 0.0
        %518 = vmatprep.subr.mxu0 0.0
        %519 = vmatpush1.msra.mxu0 0.0
        %520 = vmatprep.subr.mxu0 0.0
        %521 = vmatpush1.msra.mxu0 0.0
        %522 = vmatprep.subr.mxu0 0.0
        %523 = vmatpush1.msra.mxu0 0.0
        %524 = vmatprep.subr.mxu0 0.0
        %525 = vmatpush1.msra.mxu0 0.0
        %526 = vmatprep.subr.mxu0 0.0
        %527 = vmatpush1.msra.mxu0 0.0
        %528 = vmatprep.subr.mxu0 0.0
        %529 = vmatpush1.msra.mxu0 0.0
        %530 = vmatprep.subr.mxu0 0.0
        %531 = vmatpush1.msra.mxu0 0.0
        %532 = vmatprep.subr.mxu0 0.0
        %533 = vmatpush1.msra.mxu0 0.0
        %534 = vmatprep.subr.mxu0 0.0
        %535 = vmatpush1.msra.mxu0 0.0
        %536 = vmatprep.subr.mxu0 0.0
        %537 = vmatpush1.msra.mxu0 0.0
        %538 = vmatprep.subr.mxu0 0.0
        %539 = vmatpush1.msra.mxu0 0.0
        %540 = vmatprep.subr.mxu0 0.0
        %541 = vmatpush1.msra.mxu0 0.0
        %542 = vmatprep.mubr.f32.mxu0 0.0
        %543 = vmatmul.mubr.f32.gmra.mrb[0].mxu0 %v467
        %v544 = vpop.f32.mrb[0].mxu0
        %v545 = vadd.f32 %v463, %v544
        %v546 = vpop.f32.mrb[0].mxu0
        %547 = vmatprep.mubr.f32.mxu0 0.0
        %548 = vmatmul.mubr.f32.gmra.mrb[0].mxu0 %v470
        %v549 = vpop.f32.mrb[0].mxu0
        %v550 = vadd.f32 %v463, %v549
        %v551 = vpop.f32.mrb[0].mxu0
        %552 = vmatprep.mubr.f32.mxu0 0.0
        %553 = vmatmul.mubr.f32.gmra.mrb[0].mxu0 %v473
        %v554 = vpop.f32.mrb[0].mxu0
        %v555 = vadd.f32 %v463, %v554
        %v556 = vpop.f32.mrb[0].mxu0
        %557 = vmatprep.mubr.f32.mxu0 0.0
        %558 = vmatmul.mubr.f32.gmra.mrb[0].mxu0 %v476
        %v559 = vpop.f32.mrb[0].mxu0
        %v560 = vadd.f32 %v463, %v559
        %v561 = vpop.f32.mrb[0].mxu0
        %562 = vdwg.mxu0
        %v563 = vmul.f32 %v545, 0.5
        %v564 = vmul.f32 %v550, 0.5
        %v565 = vmul.f32 %v555, 0.5
        %v566 = vmul.f32 %v560, 0.5
        %v567 = vmul.f32 %v545, 0.70710677
        %v568 = vmul.f32 %v550, 0.70710677
        %v569 = vmul.f32 %v555, 0.70710677
        %v570 = vmul.f32 %v560, 0.70710677
        %v571 = verf.f32.pop %v567
        %v572 = verf.f32.pop %v568
        %v573 = verf.f32.pop %v569
        %v574 = verf.f32.pop %v570
        %v575 = vadd.f32 %v571, 1.0
        %v576 = vadd.f32 %v572, 1.0
        %v577 = vadd.f32 %v573, 1.0
        %v578 = vadd.f32 %v574, 1.0
        %v579 = vmul.f32 %v563, %v575
        %v580 = vmul.f32 %v564, %v576
        %v581 = vmul.f32 %v565, %v577
        %v582 = vmul.f32 %v566, %v578
        %v583 = vld [vmem:[#allocation11] sm:$0xff]
        %v584 = vld [vmem:[#allocation11 + $0x8] sm:$0xff]
        %v585 = vld [vmem:[#allocation13] sm:$0x1]
        %v587 = vlaneseq
        %v588 = vshrl.u32 %v587, 7
        %v589 = vsub.s32 0, %v588
        %v590 = vrot.slane %v585, %v589
        %v593 = vsel %vm465, %v579, 0
        %v596 = vsel %vm465, %v580, 0
        %v599 = vsel %vm465, %v581, 0
        %v602 = vsel %vm465, %v582, 0
        %604 = vmatprep.subr.mxu0 0.0
        %605 = vmatpush1.msra.mxu0 %v583
        %606 = vmatprep.subr.mxu0 0.0
        %607 = vmatpush1.msra.mxu0 %v584
        %608 = vmatprep.subr.mxu0 0.0
        %609 = vmatpush1.msra.mxu0 0.0
        %610 = vmatprep.subr.mxu0 0.0
        %611 = vmatpush1.msra.mxu0 0.0
        %612 = vmatprep.subr.mxu0 0.0
        %613 = vmatpush1.msra.mxu0 0.0
        %614 = vmatprep.subr.mxu0 0.0
        %615 = vmatpush1.msra.mxu0 0.0
        %616 = vmatprep.subr.mxu0 0.0
        %617 = vmatpush1.msra.mxu0 0.0
        %618 = vmatprep.subr.mxu0 0.0
        %619 = vmatpush1.msra.mxu0 0.0
        %620 = vmatprep.subr.mxu0 0.0
        %621 = vmatpush1.msra.mxu0 0.0
        %622 = vmatprep.subr.mxu0 0.0
        %623 = vmatpush1.msra.mxu0 0.0
        %624 = vmatprep.subr.mxu0 0.0
        %625 = vmatpush1.msra.mxu0 0.0
        %626 = vmatprep.subr.mxu0 0.0
        %627 = vmatpush1.msra.mxu0 0.0
        %628 = vmatprep.subr.mxu0 0.0
        %629 = vmatpush1.msra.mxu0 0.0
        %630 = vmatprep.subr.mxu0 0.0
        %631 = vmatpush1.msra.mxu0 0.0
        %632 = vmatprep.subr.mxu0 0.0
        %633 = vmatpush1.msra.mxu0 0.0
        %634 = vmatprep.subr.mxu0 0.0
        %635 = vmatpush1.msra.mxu0 0.0
        %636 = vmatprep.subr.mxu0 0.0
        %637 = vmatpush1.msra.mxu0 0.0
        %638 = vmatprep.subr.mxu0 0.0
        %639 = vmatpush1.msra.mxu0 0.0
        %640 = vmatprep.subr.mxu0 0.0
        %641 = vmatpush1.msra.mxu0 0.0
        %642 = vmatprep.subr.mxu0 0.0
        %643 = vmatpush1.msra.mxu0 0.0
        %644 = vmatprep.subr.mxu0 0.0
        %645 = vmatpush1.msra.mxu0 0.0
        %646 = vmatprep.subr.mxu0 0.0
        %647 = vmatpush1.msra.mxu0 0.0
        %648 = vmatprep.subr.mxu0 0.0
        %649 = vmatpush1.msra.mxu0 0.0
        %650 = vmatprep.subr.mxu0 0.0
        %651 = vmatpush1.msra.mxu0 0.0
        %652 = vmatprep.subr.mxu0 0.0
        %653 = vmatpush1.msra.mxu0 0.0
        %654 = vmatprep.subr.mxu0 0.0
        %655 = vmatpush1.msra.mxu0 0.0
        %656 = vmatprep.subr.mxu0 0.0
        %657 = vmatpush1.msra.mxu0 0.0
        %658 = vmatprep.subr.mxu0 0.0
        %659 = vmatpush1.msra.mxu0 0.0
        %660 = vmatprep.subr.mxu0 0.0
        %661 = vmatpush1.msra.mxu0 0.0
        %662 = vmatprep.subr.mxu0 0.0
        %663 = vmatpush1.msra.mxu0 0.0
        %664 = vmatprep.subr.mxu0 0.0
        %665 = vmatpush1.msra.mxu0 0.0
        %666 = vmatprep.subr.mxu0 0.0
        %667 = vmatpush1.msra.mxu0 0.0
        %668 = vmatprep.mubr.f32.mxu0 0.0
        %669 = vmatmul.mubr.f32.gmra.mrb[0].mxu0 %v593
        %v670 = vpop.f32.mrb[0].mxu0
        %v671 = vadd.f32 %v590, %v670
        %v672 = vpop.f32.mrb[0].mxu0
        %673 = vmatprep.mubr.f32.mxu0 0.0
        %674 = vmatmul.mubr.f32.gmra.mrb[0].mxu0 %v596
        %v675 = vpop.f32.mrb[0].mxu0
        %v676 = vadd.f32 %v590, %v675
        %v677 = vpop.f32.mrb[0].mxu0
        %678 = vmatprep.mubr.f32.mxu0 0.0
        %679 = vmatmul.mubr.f32.gmra.mrb[0].mxu0 %v599
        %v680 = vpop.f32.mrb[0].mxu0
        %v681 = vadd.f32 %v590, %v680
        %v682 = vpop.f32.mrb[0].mxu0
        %683 = vmatprep.mubr.f32.mxu0 0.0
        %684 = vmatmul.mubr.f32.gmra.mrb[0].mxu0 %v602
        %v685 = vpop.f32.mrb[0].mxu0
        %v686 = vadd.f32 %v590, %v685
        %v687 = vpop.f32.mrb[0].mxu0
        %688 = vdwg.mxu0
        %689 = vxpose.xlu0.b32.start [1/16] %v671, 128
        %690 = vxpose.xlu0.b32.cont [2/16] %v676, 128
        %691 = vxpose.xlu0.b32.cont [3/16] %v681, 128
        %692 = vxpose.xlu0.b32.cont [4/16] %v686, 128
        %693 = vxpose.xlu0.b32.cont [5/16] 0.0, 128
        %694 = vxpose.xlu0.b32.cont [6/16] 0.0, 128
        %695 = vxpose.xlu0.b32.cont [7/16] 0.0, 128
        %696 = vxpose.xlu0.b32.cont [8/16] 0.0, 128
        %697 = vxpose.xlu0.b32.cont [9/16] 0.0, 128
        %698 = vxpose.xlu0.b32.cont [10/16] 0.0, 128
        %699 = vxpose.xlu0.b32.cont [11/16] 0.0, 128
        %700 = vxpose.xlu0.b32.cont [12/16] 0.0, 128
        %701 = vxpose.xlu0.b32.cont [13/16] 0.0, 128
        %702 = vxpose.xlu0.b32.cont [14/16] 0.0, 128
        %703 = vxpose.xlu0.b32.cont [15/16] 0.0, 128
        %704 = vxpose.xlu0.b32.end [16/16] 0.0, 128
        %v705 = vpop.trf.xlu0
        %v706 = vpop.trf.xlu0
        %v707 = vpop.trf.xlu0
        %v708 = vpop.trf.xlu0
        %v709 = vpop.trf.xlu0
        %v710 = vpop.trf.xlu0
        %v711 = vpop.trf.xlu0
        %v712 = vpop.trf.xlu0
        %v713 = vpop.trf.xlu0
        %v714 = vpop.trf.xlu0
        %v715 = vpop.trf.xlu0
        %v716 = vpop.trf.xlu0
        %v717 = vpop.trf.xlu0
        %v718 = vpop.trf.xlu0
        %v719 = vpop.trf.xlu0
        %v720 = vpop.trf.xlu0
        %v721 = vadd.f32 %v376, %v705
        %v722 = vadd.f32 %v377, %v706
        %723 = vst.msk [vmem:[%s375] sm:$0xff] %vm378, %v721
        %724 = vst.msk [vmem:[%s375 + $0x8] sm:$0xff] %vm378, %v722
        %s725 = sand.u32 %s187, 1
        %s726 = scalar_lea.sflag [#allocation4], %s725
        %s727 = sand.u32 %s187, 1
        %s728 = smul.addr %s727, 16
        %s729 = scalar_lea.vmem [#allocation14], %s728
        // Predicated region
        $region77: #{mlp_mixer_forward.8} parent=47 // pred_check
          %p730 = pneg %p197
        $region78: #{mlp_mixer_forward.8} parent=47 // pred_check_branch
          %732 = sbr.rel (%p730) target = $region80
        $region79: #{mlp_mixer_forward.8} parent=47 // pred_region
          %s734 = ssub.s32 256, 256
          %735 = vsyncadd %s726, %s734
          %s736 = smul.addr %s27, 2
          %s737 = smul.addr %s736, 128
          %s738 = scalar_lea.hbm %s7, %s737
          %s739 = sshll.u32 %s729, 4
          %s740 = int_to_ptr.vmem [resolvable:$true] %s739
          %745 = dma.vmem_to_hbm [thread:$0]  %s740, 256, %s738, %s726, 128, 128, 8
        $region80: #{mlp_mixer_forward.8} parent=47 // pred_fallthru
          _
      $region48: #{mlp_mixer_forward.8} parent=5 // pred_fallthru
        _
      %p746 = scmp.le.s32.totalorder 2, %s22
      // Predicated region
      $region81: #{mlp_mixer_forward.8} parent=5 // pred_check
        %p747 = pneg %p746
      $region82: #{mlp_mixer_forward.8} parent=5 // pred_check_branch
        %749 = sbr.rel (%p747) target = $region84
      $region83: #{mlp_mixer_forward.8} parent=5 // pred_region
        %s750 = ssub.s32 %s22, 2
        // Predicated region
        $region85: #{mlp_mixer_forward.8} parent=83 // pred_check
          %p751 = pneg %p203
        $region86: #{mlp_mixer_forward.8} parent=83 // pred_check_branch
          %753 = sbr.rel (%p751) target = $region88
        $region87: #{mlp_mixer_forward.8} parent=83 // pred_region
          %s754 = sand.u32 %s188, 1
          %s755 = scalar_lea.sflag [#allocation4], %s754
          %s756 = sand.u32 %s188, 1
          %s757 = smul.addr %s756, 16
          %s758 = scalar_lea.vmem [#allocation14], %s757
          %759 = dma.done %s755, 256
        $region88: #{mlp_mixer_forward.8} parent=83 // pred_fallthru
          _
      $region84: #{mlp_mixer_forward.8} parent=5 // pred_fallthru
        _
    $region6: #{mlp_mixer_forward.8} parent=1 // loop_footer
      %s26 = sadd.s32 1, %s22
    $region7: #{mlp_mixer_forward.8} parent=1 // loop_footer_branch
      %21 = sbr.rel target = $region3
    $region8: #{mlp_mixer_forward.8} parent=1 // loop_exit
      _
    %760 = vsyncpa [#allocation3], 1
    %s761 = scalar_lea.sflag [#allocation3], 1
    %762 = vsyncpa %s761, 1
    %763 = vsyncpa [#allocation6], 1
    %764 = vsyncpa [#allocation9], 1
    %765 = vsyncpa [#allocation12], 1
    %766 = vsyncpa [#allocation4], 1
    %s767 = scalar_lea.sflag [#allocation4], 1
    %768 = vsyncpa %s767, 1

// kernel: mlp_mixer_forward.9
$region0: #{mlp_mixer_forward.9}
  #allocation0 [shape = 'u32[]', space=smem, size = 0x4, offset = 0x4, fixed_abs, tag = 'smem constant byte address 0x4 - core index']
  #allocation1 [shape = 'u32[144,128]{1,0:T(1,128)}', space=vmem, size = 0x12000, scoped, tag = 'internal scratch']
  %s0 = inlined_call_operand.hbm [shape: f32[32,128], index: 0, kind: input, shape index: {}]
  %s1 = inlined_call_operand.hbm [shape: f32[1,128], index: 1, kind: input, shape index: {}]
  %s2 = inlined_call_operand.hbm [shape: f32[1,128], index: 2, kind: input, shape index: {}]
  %s3 = inlined_call_operand.hbm [shape: f32[128,128], index: 3, kind: input, shape index: {}]
  %s4 = inlined_call_operand.hbm [shape: f32[1,128], index: 4, kind: input, shape index: {}]
  %s5 = inlined_call_operand.hbm [shape: f32[128,128], index: 5, kind: input, shape index: {}]
  %s6 = inlined_call_operand.hbm [shape: f32[1,128], index: 6, kind: input, shape index: {}]
  %s7 = inlined_call_operand.hbm [shape: f32[32,128], index: 7, kind: output, shape index: {}]
  %s8 = sld [smem:[#allocation0]]
  $region66: #{mlp_mixer_forward.9} parent=0
    _
  %s10 = ssub.s32 1, %s8
  %s11 = scalar_select 0, %s10, %s8
  $region1: #{mlp_mixer_forward.9} parent=0
    #allocation2 [shape = 'u8[16384]{0}', space=vmem, size = 0x4000, scoped, tag = 'input window, operand 0, single buffered']
    #allocation3 [shape = 's32[1]{0}', space=sflag, size = 0x4, scoped, tag = 'scoped memory for mlp_mixer_forward.9']
    #allocation4 [shape = 's32[1]{0}', space=sflag, size = 0x4, scoped, tag = 'scoped memory for mlp_mixer_forward.9']
    #allocation5 [shape = 'u8[512]{0}', space=vmem, size = 0x400, scoped, tag = 'input window, operand 1, single buffered']
    #allocation6 [shape = 's32[1]{0}', space=sflag, size = 0x4, scoped, tag = 'scoped memory for mlp_mixer_forward.9']
    #allocation7 [shape = 'u8[512]{0}', space=vmem, size = 0x400, scoped, tag = 'input window, operand 2, single buffered']
    #allocation8 [shape = 'u8[65536]{0}', space=vmem, size = 0x10000, scoped, tag = 'input window, operand 3, single buffered']
    #allocation9 [shape = 's32[1]{0}', space=sflag, size = 0x4, scoped, tag = 'scoped memory for mlp_mixer_forward.9']
    #allocation10 [shape = 'u8[512]{0}', space=vmem, size = 0x400, scoped, tag = 'input window, operand 4, single buffered']
    #allocation11 [shape = 'u8[65536]{0}', space=vmem, size = 0x10000, scoped, tag = 'input window, operand 5, single buffered']
    #allocation12 [shape = 's32[1]{0}', space=sflag, size = 0x4, scoped, tag = 'scoped memory for mlp_mixer_forward.9']
    #allocation13 [shape = 'u8[512]{0}', space=vmem, size = 0x400, scoped, tag = 'input window, operand 6, single buffered']
    #allocation14 [shape = 'u8[16384]{0}', space=vmem, size = 0x4000, scoped, tag = 'output window, operand 0, single buffered']
    %12 = vsyncpa [#allocation3], 0
    %13 = vsyncpa [#allocation6], 0
    %14 = vsyncpa [#allocation9], 0
    %15 = vsyncpa [#allocation12], 0
    %16 = vsyncpa [#allocation4], 0
    // Predicated region
    $region2: #{mlp_mixer_forward.9} parent=1 // pred_check
      _
    $region3: #{mlp_mixer_forward.9} parent=1 // pred_check_branch
      %18 = sbr.rel (0) target = $region5
    $region4: #{mlp_mixer_forward.9} parent=1 // pred_region
      %s20 = ssub.s32 512, 512
      %21 = vsyncadd [#allocation3], %s20
      %s22 = sshll.u32 [#allocation2], 4
      %s23 = int_to_ptr.vmem [resolvable:$true] %s22
      %28 = dma.hbm_to_vmem [thread:$0]  %s0, 512, %s23, [#allocation3], 128, 128, 8
    $region5: #{mlp_mixer_forward.9} parent=1 // pred_fallthru
      _
    // Predicated region
    $region6: #{mlp_mixer_forward.9} parent=1 // pred_check
      _
    $region7: #{mlp_mixer_forward.9} parent=1 // pred_check_branch
      %30 = sbr.rel (0) target = $region9
    $region8: #{mlp_mixer_forward.9} parent=1 // pred_region
      %s32 = ssub.s32 16, 16
      %33 = vsyncadd [#allocation6], %s32
      %s35 = sshll.u32 [#allocation5], 4
      %s36 = int_to_ptr.vmem [resolvable:$true] %s35
      %38 = dma.hbm_to_vmem [thread:$0]  %s1, 16, %s36, [#allocation6]
    $region9: #{mlp_mixer_forward.9} parent=1 // pred_fallthru
      _
    // Predicated region
    $region10: #{mlp_mixer_forward.9} parent=1 // pred_check
      _
    $region11: #{mlp_mixer_forward.9} parent=1 // pred_check_branch
      %40 = sbr.rel (0) target = $region13
    $region12: #{mlp_mixer_forward.9} parent=1 // pred_region
      %s42 = ssub.s32 16, 16
      %43 = vsyncadd [#allocation6], %s42
      %s45 = sshll.u32 [#allocation7], 4
      %s46 = int_to_ptr.vmem [resolvable:$true] %s45
      %48 = dma.hbm_to_vmem [thread:$0]  %s2, 16, %s46, [#allocation6]
    $region13: #{mlp_mixer_forward.9} parent=1 // pred_fallthru
      _
    // Predicated region
    $region14: #{mlp_mixer_forward.9} parent=1 // pred_check
      _
    $region15: #{mlp_mixer_forward.9} parent=1 // pred_check_branch
      %50 = sbr.rel (0) target = $region17
    $region16: #{mlp_mixer_forward.9} parent=1 // pred_region
      %s52 = ssub.s32 2048, 2048
      %53 = vsyncadd [#allocation9], %s52
      %s54 = sshll.u32 [#allocation8], 4
      %s55 = int_to_ptr.vmem [resolvable:$true] %s54
      %60 = dma.hbm_to_vmem [thread:$0]  %s3, 2048, %s55, [#allocation9], 128, 128, 8
    $region17: #{mlp_mixer_forward.9} parent=1 // pred_fallthru
      _
    // Predicated region
    $region18: #{mlp_mixer_forward.9} parent=1 // pred_check
      _
    $region19: #{mlp_mixer_forward.9} parent=1 // pred_check_branch
      %62 = sbr.rel (0) target = $region21
    $region20: #{mlp_mixer_forward.9} parent=1 // pred_region
      %s64 = ssub.s32 16, 16
      %65 = vsyncadd [#allocation9], %s64
      %s67 = sshll.u32 [#allocation10], 4
      %s68 = int_to_ptr.vmem [resolvable:$true] %s67
      %70 = dma.hbm_to_vmem [thread:$0]  %s4, 16, %s68, [#allocation9]
    $region21: #{mlp_mixer_forward.9} parent=1 // pred_fallthru
      _
    // Predicated region
    $region22: #{mlp_mixer_forward.9} parent=1 // pred_check
      _
    $region23: #{mlp_mixer_forward.9} parent=1 // pred_check_branch
      %72 = sbr.rel (0) target = $region25
    $region24: #{mlp_mixer_forward.9} parent=1 // pred_region
      %s74 = ssub.s32 2048, 2048
      %75 = vsyncadd [#allocation12], %s74
      %s76 = sshll.u32 [#allocation11], 4
      %s77 = int_to_ptr.vmem [resolvable:$true] %s76
      %82 = dma.hbm_to_vmem [thread:$0]  %s5, 2048, %s77, [#allocation12], 128, 128, 8
    $region25: #{mlp_mixer_forward.9} parent=1 // pred_fallthru
      _
    // Predicated region
    $region26: #{mlp_mixer_forward.9} parent=1 // pred_check
      _
    $region27: #{mlp_mixer_forward.9} parent=1 // pred_check_branch
      %84 = sbr.rel (0) target = $region29
    $region28: #{mlp_mixer_forward.9} parent=1 // pred_region
      %s86 = ssub.s32 16, 16
      %87 = vsyncadd [#allocation12], %s86
      %s89 = sshll.u32 [#allocation13], 4
      %s90 = int_to_ptr.vmem [resolvable:$true] %s89
      %92 = dma.hbm_to_vmem [thread:$0]  %s6, 16, %s90, [#allocation12]
    $region29: #{mlp_mixer_forward.9} parent=1 // pred_fallthru
      _
    // Predicated region
    $region30: #{mlp_mixer_forward.9} parent=1 // pred_check
      _
    $region31: #{mlp_mixer_forward.9} parent=1 // pred_check_branch
      %94 = sbr.rel (0) target = $region33
    $region32: #{mlp_mixer_forward.9} parent=1 // pred_region
      %95 = dma.done [#allocation3], 512
    $region33: #{mlp_mixer_forward.9} parent=1 // pred_fallthru
      _
    // Predicated region
    $region34: #{mlp_mixer_forward.9} parent=1 // pred_check
      _
    $region35: #{mlp_mixer_forward.9} parent=1 // pred_check_branch
      %97 = sbr.rel (0) target = $region37
    $region36: #{mlp_mixer_forward.9} parent=1 // pred_region
      %98 = dma.done [#allocation6], 16
    $region37: #{mlp_mixer_forward.9} parent=1 // pred_fallthru
      _
    // Predicated region
    $region38: #{mlp_mixer_forward.9} parent=1 // pred_check
      _
    $region39: #{mlp_mixer_forward.9} parent=1 // pred_check_branch
      %100 = sbr.rel (0) target = $region41
    $region40: #{mlp_mixer_forward.9} parent=1 // pred_region
      %101 = dma.done [#allocation6], 16
    $region41: #{mlp_mixer_forward.9} parent=1 // pred_fallthru
      _
    // Predicated region
    $region42: #{mlp_mixer_forward.9} parent=1 // pred_check
      _
    $region43: #{mlp_mixer_forward.9} parent=1 // pred_check_branch
      %103 = sbr.rel (0) target = $region45
    $region44: #{mlp_mixer_forward.9} parent=1 // pred_region
      %104 = dma.done [#allocation9], 2048
    $region45: #{mlp_mixer_forward.9} parent=1 // pred_fallthru
      _
    // Predicated region
    $region46: #{mlp_mixer_forward.9} parent=1 // pred_check
      _
    $region47: #{mlp_mixer_forward.9} parent=1 // pred_check_branch
      %106 = sbr.rel (0) target = $region49
    $region48: #{mlp_mixer_forward.9} parent=1 // pred_region
      %107 = dma.done [#allocation9], 16
    $region49: #{mlp_mixer_forward.9} parent=1 // pred_fallthru
      _
    // Predicated region
    $region50: #{mlp_mixer_forward.9} parent=1 // pred_check
      _
    $region51: #{mlp_mixer_forward.9} parent=1 // pred_check_branch
      %109 = sbr.rel (0) target = $region53
    $region52: #{mlp_mixer_forward.9} parent=1 // pred_region
      %110 = dma.done [#allocation12], 2048
    $region53: #{mlp_mixer_forward.9} parent=1 // pred_fallthru
      _
    // Predicated region
    $region54: #{mlp_mixer_forward.9} parent=1 // pred_check
      _
    $region55: #{mlp_mixer_forward.9} parent=1 // pred_check_branch
      %112 = sbr.rel (0) target = $region57
    $region56: #{mlp_mixer_forward.9} parent=1 // pred_region
      %113 = dma.done [#allocation12], 16
    $region57: #{mlp_mixer_forward.9} parent=1 // pred_fallthru
      _
    %v114 = vld [vmem:[#allocation2] sm:$0xff]
    %v115 = vld [vmem:[#allocation2 + $0x8] sm:$0xff]
    %v116 = vld [vmem:[#allocation2 + $0x10] sm:$0xff]
    %v117 = vld [vmem:[#allocation2 + $0x18] sm:$0xff]
    %118 = vadd.xlane.f32.xlu0 %v114
    %v119 = vpop.xlane.xlu0 %118
    %120 = vadd.xlane.f32.xlu0 %v115
    %v121 = vpop.xlane.xlu0 %120
    %122 = vadd.xlane.f32.xlu0 %v116
    %v123 = vpop.xlane.xlu0 %122
    %124 = vadd.xlane.f32.xlu0 %v117
    %v125 = vpop.xlane.xlu0 %124
    %v126 = vmul.f32 %v119, 0.03125
    %v127 = vmul.f32 %v121, 0.03125
    %v128 = vmul.f32 %v123, 0.03125
    %v129 = vmul.f32 %v125, 0.03125
    %v130 = vlaneseq
    %v131 = vand.u32 %v130, 127
    %vm132 = vcmp.lt.s32.totalorder %v131, 32
    %v133 = vsub.f32 %v114, %v126
    %v134 = vsub.f32 %v115, %v127
    %v135 = vsub.f32 %v116, %v128
    %v136 = vsub.f32 %v117, %v129
    %v137 = vsel %vm132, %v133, 0.0
    %v138 = vsel %vm132, %v134, 0.0
    %v139 = vsel %vm132, %v135, 0.0
    %v140 = vsel %vm132, %v136, 0.0
    %v141 = vmul.f32 %v137, %v137
    %v142 = vmul.f32 %v138, %v138
    %v143 = vmul.f32 %v139, %v139
    %v144 = vmul.f32 %v140, %v140
    %145 = vadd.xlane.f32.xlu0 %v141
    %v146 = vpop.xlane.xlu0 %145
    %147 = vadd.xlane.f32.xlu0 %v142
    %v148 = vpop.xlane.xlu0 %147
    %149 = vadd.xlane.f32.xlu0 %v143
    %v150 = vpop.xlane.xlu0 %149
    %151 = vadd.xlane.f32.xlu0 %v144
    %v152 = vpop.xlane.xlu0 %151
    %v153 = vmul.f32 %v146, 0.03125
    %v154 = vmul.f32 %v148, 0.03125
    %v155 = vmul.f32 %v150, 0.03125
    %v156 = vmul.f32 %v152, 0.03125
    %v157 = vadd.f32 %v153, 1e-05
    %v158 = vadd.f32 %v154, 1e-05
    %v159 = vadd.f32 %v155, 1e-05
    %v160 = vadd.f32 %v156, 1e-05
    %v161 = vrsqrt.pop %v157
    %v162 = vrsqrt.pop %v158
    %v163 = vrsqrt.pop %v159
    %v164 = vrsqrt.pop %v160
    %v165 = vmul.f32 %v137, %v161
    %v166 = vmul.f32 %v138, %v162
    %v167 = vmul.f32 %v139, %v163
    %v168 = vmul.f32 %v140, %v164
    %v169 = vld [vmem:[#allocation5] sm:$0x1]
    %v171 = vlaneseq
    %v172 = vshrl.u32 %v171, 7
    %v173 = vsub.s32 0, %v172
    %v174 = vrot.slane %v169, %v173
    %v176 = vmul.f32 %v165, %v174
    %v177 = vmul.f32 %v166, %v174
    %v178 = vmul.f32 %v167, %v174
    %v179 = vmul.f32 %v168, %v174
    %v180 = vld [vmem:[#allocation7] sm:$0x1]
    %v182 = vlaneseq
    %v183 = vshrl.u32 %v182, 7
    %v184 = vsub.s32 0, %v183
    %v185 = vrot.slane %v180, %v184
    %v187 = vadd.f32 %v176, %v185
    %v188 = vadd.f32 %v177, %v185
    %v189 = vadd.f32 %v178, %v185
    %v190 = vadd.f32 %v179, %v185
    %v191 = vld [vmem:[#allocation8] sm:$0xff]
    %v192 = vld [vmem:[#allocation8 + $0x8] sm:$0xff]
    %v193 = vld [vmem:[#allocation8 + $0x10] sm:$0xff]
    %v194 = vld [vmem:[#allocation8 + $0x18] sm:$0xff]
    %v195 = vld [vmem:[#allocation8 + $0x20] sm:$0xff]
    %v196 = vld [vmem:[#allocation8 + $0x28] sm:$0xff]
    %v197 = vld [vmem:[#allocation8 + $0x30] sm:$0xff]
    %v198 = vld [vmem:[#allocation8 + $0x38] sm:$0xff]
    %v199 = vld [vmem:[#allocation8 + $0x40] sm:$0xff]
    %v200 = vld [vmem:[#allocation8 + $0x48] sm:$0xff]
    %v201 = vld [vmem:[#allocation8 + $0x50] sm:$0xff]
    %v202 = vld [vmem:[#allocation8 + $0x58] sm:$0xff]
    %v203 = vld [vmem:[#allocation8 + $0x60] sm:$0xff]
    %v204 = vld [vmem:[#allocation8 + $0x68] sm:$0xff]
    %v205 = vld [vmem:[#allocation8 + $0x70] sm:$0xff]
    %v206 = vld [vmem:[#allocation8 + $0x78] sm:$0xff]
    %v207 = vld [vmem:[#allocation10] sm:$0x1]
    %v209 = vlaneseq
    %v210 = vshrl.u32 %v209, 7
    %v211 = vsub.s32 0, %v210
    %v212 = vrot.slane %v207, %v211
    %214 = vmatprep.subr.mxu0 0.0
    %215 = vmatpush1.msra.mxu0 %v191
    %216 = vmatprep.subr.mxu0 0.0
    %217 = vmatpush1.msra.mxu0 %v192
    %218 = vmatprep.subr.mxu0 0.0
    %219 = vmatpush1.msra.mxu0 %v193
    %220 = vmatprep.subr.mxu0 0.0
    %221 = vmatpush1.msra.mxu0 %v194
    %222 = vmatprep.subr.mxu0 0.0
    %223 = vmatpush1.msra.mxu0 %v195
    %224 = vmatprep.subr.mxu0 0.0
    %225 = vmatpush1.msra.mxu0 %v196
    %226 = vmatprep.subr.mxu0 0.0
    %227 = vmatpush1.msra.mxu0 %v197
    %228 = vmatprep.subr.mxu0 0.0
    %229 = vmatpush1.msra.mxu0 %v198
    %230 = vmatprep.subr.mxu0 0.0
    %231 = vmatpush1.msra.mxu0 %v199
    %232 = vmatprep.subr.mxu0 0.0
    %233 = vmatpush1.msra.mxu0 %v200
    %234 = vmatprep.subr.mxu0 0.0
    %235 = vmatpush1.msra.mxu0 %v201
    %236 = vmatprep.subr.mxu0 0.0
    %237 = vmatpush1.msra.mxu0 %v202
    %238 = vmatprep.subr.mxu0 0.0
    %239 = vmatpush1.msra.mxu0 %v203
    %240 = vmatprep.subr.mxu0 0.0
    %241 = vmatpush1.msra.mxu0 %v204
    %242 = vmatprep.subr.mxu0 0.0
    %243 = vmatpush1.msra.mxu0 %v205
    %244 = vmatprep.subr.mxu0 0.0
    %245 = vmatpush1.msra.mxu0 %v206
    %246 = vmatprep.subr.mxu0 0.0
    %247 = vmatpush1.msra.mxu0 0.0
    %248 = vmatprep.subr.mxu0 0.0
    %249 = vmatpush1.msra.mxu0 0.0
    %250 = vmatprep.subr.mxu0 0.0
    %251 = vmatpush1.msra.mxu0 0.0
    %252 = vmatprep.subr.mxu0 0.0
    %253 = vmatpush1.msra.mxu0 0.0
    %254 = vmatprep.subr.mxu0 0.0
    %255 = vmatpush1.msra.mxu0 0.0
    %256 = vmatprep.subr.mxu0 0.0
    %257 = vmatpush1.msra.mxu0 0.0
    %258 = vmatprep.subr.mxu0 0.0
    %259 = vmatpush1.msra.mxu0 0.0
    %260 = vmatprep.subr.mxu0 0.0
    %261 = vmatpush1.msra.mxu0 0.0
    %262 = vmatprep.subr.mxu0 0.0
    %263 = vmatpush1.msra.mxu0 0.0
    %264 = vmatprep.subr.mxu0 0.0
    %265 = vmatpush1.msra.mxu0 0.0
    %266 = vmatprep.subr.mxu0 0.0
    %267 = vmatpush1.msra.mxu0 0.0
    %268 = vmatprep.subr.mxu0 0.0
    %269 = vmatpush1.msra.mxu0 0.0
    %270 = vmatprep.subr.mxu0 0.0
    %271 = vmatpush1.msra.mxu0 0.0
    %272 = vmatprep.subr.mxu0 0.0
    %273 = vmatpush1.msra.mxu0 0.0
    %274 = vmatprep.subr.mxu0 0.0
    %275 = vmatpush1.msra.mxu0 0.0
    %276 = vmatprep.subr.mxu0 0.0
    %277 = vmatpush1.msra.mxu0 0.0
    %278 = vmatprep.mubr.f32.mxu0 0.0
    %279 = vmatmul.mubr.f32.gmra.mrb[0].mxu0 %v187
    %v280 = vpop.f32.mrb[0].mxu0
    %v281 = vadd.f32 %v212, %v280
    %v282 = vpop.f32.mrb[0].mxu0
    %283 = vmatprep.mubr.f32.mxu0 0.0
    %284 = vmatmul.mubr.f32.gmra.mrb[0].mxu0 %v188
    %v285 = vpop.f32.mrb[0].mxu0
    %v286 = vadd.f32 %v212, %v285
    %v287 = vpop.f32.mrb[0].mxu0
    %288 = vmatprep.mubr.f32.mxu0 0.0
    %289 = vmatmul.mubr.f32.gmra.mrb[0].mxu0 %v189
    %v290 = vpop.f32.mrb[0].mxu0
    %v291 = vadd.f32 %v212, %v290
    %v292 = vpop.f32.mrb[0].mxu0
    %293 = vmatprep.mubr.f32.mxu0 0.0
    %294 = vmatmul.mubr.f32.gmra.mrb[0].mxu0 %v190
    %v295 = vpop.f32.mrb[0].mxu0
    %v296 = vadd.f32 %v212, %v295
    %v297 = vpop.f32.mrb[0].mxu0
    %298 = vdwg.mxu0
    %v299 = vmul.f32 %v281, 0.5
    %v300 = vmul.f32 %v286, 0.5
    %v301 = vmul.f32 %v291, 0.5
    %v302 = vmul.f32 %v296, 0.5
    %v303 = vmul.f32 %v281, 0.70710677
    %v304 = vmul.f32 %v286, 0.70710677
    %v305 = vmul.f32 %v291, 0.70710677
    %v306 = vmul.f32 %v296, 0.70710677
    %v307 = verf.f32.pop %v303
    %v308 = verf.f32.pop %v304
    %v309 = verf.f32.pop %v305
    %v310 = verf.f32.pop %v306
    %v311 = vadd.f32 %v307, 1.0
    %v312 = vadd.f32 %v308, 1.0
    %v313 = vadd.f32 %v309, 1.0
    %v314 = vadd.f32 %v310, 1.0
    %v315 = vmul.f32 %v299, %v311
    %v316 = vmul.f32 %v300, %v312
    %v317 = vmul.f32 %v301, %v313
    %v318 = vmul.f32 %v302, %v314
    %v319 = vld [vmem:[#allocation11] sm:$0xff]
    %v320 = vld [vmem:[#allocation11 + $0x8] sm:$0xff]
    %v321 = vld [vmem:[#allocation11 + $0x10] sm:$0xff]
    %v322 = vld [vmem:[#allocation11 + $0x18] sm:$0xff]
    %v323 = vld [vmem:[#allocation11 + $0x20] sm:$0xff]
    %v324 = vld [vmem:[#allocation11 + $0x28] sm:$0xff]
    %v325 = vld [vmem:[#allocation11 + $0x30] sm:$0xff]
    %v326 = vld [vmem:[#allocation11 + $0x38] sm:$0xff]
    %v327 = vld [vmem:[#allocation11 + $0x40] sm:$0xff]
    %v328 = vld [vmem:[#allocation11 + $0x48] sm:$0xff]
    %v329 = vld [vmem:[#allocation11 + $0x50] sm:$0xff]
    %v330 = vld [vmem:[#allocation11 + $0x58] sm:$0xff]
    %v331 = vld [vmem:[#allocation11 + $0x60] sm:$0xff]
    %v332 = vld [vmem:[#allocation11 + $0x68] sm:$0xff]
    %v333 = vld [vmem:[#allocation11 + $0x70] sm:$0xff]
    %v334 = vld [vmem:[#allocation11 + $0x78] sm:$0xff]
    %v335 = vld [vmem:[#allocation13] sm:$0x1]
    %v337 = vlaneseq
    %v338 = vshrl.u32 %v337, 7
    %v339 = vsub.s32 0, %v338
    %v340 = vrot.slane %v335, %v339
    %342 = vmatprep.subr.mxu0 0.0
    %343 = vmatpush1.msra.mxu0 %v319
    %344 = vmatprep.subr.mxu0 0.0
    %345 = vmatpush1.msra.mxu0 %v320
    %346 = vmatprep.subr.mxu0 0.0
    %347 = vmatpush1.msra.mxu0 %v321
    %348 = vmatprep.subr.mxu0 0.0
    %349 = vmatpush1.msra.mxu0 %v322
    %350 = vmatprep.subr.mxu0 0.0
    %351 = vmatpush1.msra.mxu0 %v323
    %352 = vmatprep.subr.mxu0 0.0
    %353 = vmatpush1.msra.mxu0 %v324
    %354 = vmatprep.subr.mxu0 0.0
    %355 = vmatpush1.msra.mxu0 %v325
    %356 = vmatprep.subr.mxu0 0.0
    %357 = vmatpush1.msra.mxu0 %v326
    %358 = vmatprep.subr.mxu0 0.0
    %359 = vmatpush1.msra.mxu0 %v327
    %360 = vmatprep.subr.mxu0 0.0
    %361 = vmatpush1.msra.mxu0 %v328
    %362 = vmatprep.subr.mxu0 0.0
    %363 = vmatpush1.msra.mxu0 %v329
    %364 = vmatprep.subr.mxu0 0.0
    %365 = vmatpush1.msra.mxu0 %v330
    %366 = vmatprep.subr.mxu0 0.0
    %367 = vmatpush1.msra.mxu0 %v331
    %368 = vmatprep.subr.mxu0 0.0
    %369 = vmatpush1.msra.mxu0 %v332
    %370 = vmatprep.subr.mxu0 0.0
    %371 = vmatpush1.msra.mxu0 %v333
    %372 = vmatprep.subr.mxu0 0.0
    %373 = vmatpush1.msra.mxu0 %v334
    %374 = vmatprep.subr.mxu0 0.0
    %375 = vmatpush1.msra.mxu0 0.0
    %376 = vmatprep.subr.mxu0 0.0
    %377 = vmatpush1.msra.mxu0 0.0
    %378 = vmatprep.subr.mxu0 0.0
    %379 = vmatpush1.msra.mxu0 0.0
    %380 = vmatprep.subr.mxu0 0.0
    %381 = vmatpush1.msra.mxu0 0.0
    %382 = vmatprep.subr.mxu0 0.0
    %383 = vmatpush1.msra.mxu0 0.0
    %384 = vmatprep.subr.mxu0 0.0
    %385 = vmatpush1.msra.mxu0 0.0
    %386 = vmatprep.subr.mxu0 0.0
    %387 = vmatpush1.msra.mxu0 0.0
    %388 = vmatprep.subr.mxu0 0.0
    %389 = vmatpush1.msra.mxu0 0.0
    %390 = vmatprep.subr.mxu0 0.0
    %391 = vmatpush1.msra.mxu0 0.0
    %392 = vmatprep.subr.mxu0 0.0
    %393 = vmatpush1.msra.mxu0 0.0
    %394 = vmatprep.subr.mxu0 0.0
    %395 = vmatpush1.msra.mxu0 0.0
    %396 = vmatprep.subr.mxu0 0.0
    %397 = vmatpush1.msra.mxu0 0.0
    %398 = vmatprep.subr.mxu0 0.0
    %399 = vmatpush1.msra.mxu0 0.0
    %400 = vmatprep.subr.mxu0 0.0
    %401 = vmatpush1.msra.mxu0 0.0
    %402 = vmatprep.subr.mxu0 0.0
    %403 = vmatpush1.msra.mxu0 0.0
    %404 = vmatprep.subr.mxu0 0.0
    %405 = vmatpush1.msra.mxu0 0.0
    %406 = vmatprep.mubr.f32.mxu0 0.0
    %407 = vmatmul.mubr.f32.gmra.mrb[0].mxu0 %v315
    %v408 = vpop.f32.mrb[0].mxu0
    %v409 = vadd.f32 %v340, %v408
    %v410 = vpop.f32.mrb[0].mxu0
    %411 = vmatprep.mubr.f32.mxu0 0.0
    %412 = vmatmul.mubr.f32.gmra.mrb[0].mxu0 %v316
    %v413 = vpop.f32.mrb[0].mxu0
    %v414 = vadd.f32 %v340, %v413
    %v415 = vpop.f32.mrb[0].mxu0
    %416 = vmatprep.mubr.f32.mxu0 0.0
    %417 = vmatmul.mubr.f32.gmra.mrb[0].mxu0 %v317
    %v418 = vpop.f32.mrb[0].mxu0
    %v419 = vadd.f32 %v340, %v418
    %v420 = vpop.f32.mrb[0].mxu0
    %421 = vmatprep.mubr.f32.mxu0 0.0
    %422 = vmatmul.mubr.f32.gmra.mrb[0].mxu0 %v318
    %v423 = vpop.f32.mrb[0].mxu0
    %v424 = vadd.f32 %v340, %v423
    %v425 = vpop.f32.mrb[0].mxu0
    %426 = vdwg.mxu0
    %v427 = vadd.f32 %v114, %v409
    %v428 = vadd.f32 %v115, %v414
    %v429 = vadd.f32 %v116, %v419
    %v430 = vadd.f32 %v117, %v424
    %431 = vst [vmem:[#allocation14] sm:$0xff] %v427
    %432 = vst [vmem:[#allocation14 + $0x8] sm:$0xff] %v428
    %433 = vst [vmem:[#allocation14 + $0x10] sm:$0xff] %v429
    %434 = vst [vmem:[#allocation14 + $0x18] sm:$0xff] %v430
    // Predicated region
    $region58: #{mlp_mixer_forward.9} parent=1 // pred_check
      _
    $region59: #{mlp_mixer_forward.9} parent=1 // pred_check_branch
      %436 = sbr.rel (0) target = $region61
    $region60: #{mlp_mixer_forward.9} parent=1 // pred_region
      %s438 = ssub.s32 512, 512
      %439 = vsyncadd [#allocation4], %s438
      %s440 = sshll.u32 [#allocation14], 4
      %s441 = int_to_ptr.vmem [resolvable:$true] %s440
      %446 = dma.vmem_to_hbm [thread:$0]  %s441, 512, %s7, [#allocation4], 128, 128, 8
    $region61: #{mlp_mixer_forward.9} parent=1 // pred_fallthru
      _
    // Predicated region
    $region62: #{mlp_mixer_forward.9} parent=1 // pred_check
      _
    $region63: #{mlp_mixer_forward.9} parent=1 // pred_check_branch
      %448 = sbr.rel (0) target = $region65
    $region64: #{mlp_mixer_forward.9} parent=1 // pred_region
      %449 = dma.done [#allocation4], 512
    $region65: #{mlp_mixer_forward.9} parent=1 // pred_fallthru
      _
    %450 = vsyncpa [#allocation3], 1
    %451 = vsyncpa [#allocation6], 1
    %452 = vsyncpa [#allocation9], 1
    %453 = vsyncpa [#allocation12], 1
    %454 = vsyncpa [#allocation4], 1

// kernel: mlp_mixer_forward.12
$region0: #{mlp_mixer_forward.12}
  #allocation0 [shape = 'u32[]', space=smem, size = 0x4, offset = 0x4, fixed_abs, tag = 'smem constant byte address 0x4 - core index']
  #allocation1 [shape = 'u32[144,128]{1,0:T(1,128)}', space=vmem, size = 0x12000, scoped, tag = 'internal scratch']
  %s0 = inlined_call_operand.hbm [shape: f32[2,16,32], index: 0, kind: input, shape index: {}]
  %s1 = inlined_call_operand.hbm [shape: f32[1,32], index: 1, kind: input, shape index: {}]
  %s2 = inlined_call_operand.hbm [shape: f32[1,32], index: 2, kind: input, shape index: {}]
  %s3 = inlined_call_operand.hbm [shape: f32[2,1,32], index: 3, kind: output, shape index: {}]
  %s4 = sld [smem:[#allocation0]]
  $region57: #{mlp_mixer_forward.12} parent=0
    _
  %s6 = ssub.s32 1, %s4
  %s7 = scalar_select 0, %s6, %s4
  $region1: #{mlp_mixer_forward.12} parent=0
    #allocation2 [shape = 'u8[16384]{0}', space=vmem, size = 0x4000, scoped, tag = 'input window, operand 0']
    #allocation3 [shape = 's32[2]{0}', space=sflag, size = 0x8, scoped, tag = 'scoped memory for mlp_mixer_forward.12']
    #allocation4 [shape = 's32[2]{0}', space=sflag, size = 0x8, scoped, tag = 'scoped memory for mlp_mixer_forward.12']
    #allocation5 [shape = 'u8[512]{0}', space=vmem, size = 0x400, scoped, tag = 'input window, operand 1, single buffered']
    #allocation6 [shape = 's32[1]{0}', space=sflag, size = 0x4, scoped, tag = 'scoped memory for mlp_mixer_forward.12']
    #allocation7 [shape = 'u8[512]{0}', space=vmem, size = 0x400, scoped, tag = 'input window, operand 2, single buffered']
    #allocation8 [shape = 'u8[1024]{0}', space=vmem, size = 0x400, scoped, tag = 'output window, operand 0']
    %8 = vsyncpa [#allocation3], 0
    %s9 = scalar_lea.sflag [#allocation3], 1
    %10 = vsyncpa %s9, 0
    %11 = vsyncpa [#allocation6], 0
    %12 = vsyncpa [#allocation4], 0
    %s13 = scalar_lea.sflag [#allocation4], 1
    %14 = vsyncpa %s13, 0
    loop: start=0, step=1, limit=4
    $region2: #{mlp_mixer_forward.12} parent=1 // loop_pre_header
      _
    $region3: #{mlp_mixer_forward.12} parent=1 // loop_header
      %s16 = sphi 0, %s20
      %p17 = scmp.ge.s32.totalorder %s16, 4
      %s26 = sphi 0, %s28
      %s29 = sphi 0, %s26
      %s30 = sphi 0, %s29
      %s46 = sphi 0, %s30
      %s50 = sphi 0, %s50
      %s52 = sphi 0, %s50
      %s53 = sphi 0, %s52
      %s67 = sphi 0, %s53
      %s71 = sphi 0, %s71
      %s73 = sphi 0, %s71
      %s74 = sphi 0, %s73
      %s88 = sphi 0, %s74
      %s94 = sphi 0, %s96
      %s97 = sphi 0, %s94
      %s98 = sphi 0, %s97
      %s114 = sphi 0, %s98
    $region4: #{mlp_mixer_forward.12} parent=1 // loop_header_branch
      %19 = sbr.rel (%p17) target = $region8
    $region5: #{mlp_mixer_forward.12} parent=1 // loop_body
      %s21 = ssub.s32 %s16, 1
      %s22 = ssub.s32 %s16, 2
      %s23 = sadd.s32 %s16, 1
      %s24 = ssub.s32 %s16, %s23
      %p25 = scmp.eq.s32.totalorder %s24, 0
      %s27 = sadd.s32 %s26, 1
      %s28 = scalar_select %p25, %s26, %s27
      %p31 = pneg %p25
      %p32 = scmp.eq.s32.totalorder %s16, 1
      %p33 = por %p31, %p32
      %p34 = scmp.ne.s32.totalorder %s26, %s29
      %p35 = scmp.eq.s32.totalorder %s16, 0
      %p36 = por %p34, %p35
      %p37 = scmp.ne.s32.totalorder %s26, %s29
      %p38 = scmp.eq.s32.totalorder %s21, 1
      %p39 = por %p37, %p38
      %p40 = scmp.ne.s32.totalorder %s29, %s30
      %p41 = scmp.eq.s32.totalorder %s21, 0
      %p42 = por %p40, %p41
      %p43 = scmp.ne.s32.totalorder %s29, %s30
      %p44 = scmp.eq.s32.totalorder %s22, 1
      %p45 = por %p43, %p44
      %p47 = scmp.ne.s32.totalorder %s30, %s46
      %p48 = scmp.eq.s32.totalorder %s22, 0
      %p49 = por %p47, %p48
      %s51 = sadd.s32 %s50, 1
      %p54 = scmp.eq.s32.totalorder %s16, 1
      %p55 = scmp.ne.s32.totalorder %s50, %s52
      %p56 = scmp.eq.s32.totalorder %s16, 0
      %p57 = por %p55, %p56
      %p58 = scmp.ne.s32.totalorder %s50, %s52
      %p59 = scmp.eq.s32.totalorder %s21, 1
      %p60 = por %p58, %p59
      %p61 = scmp.ne.s32.totalorder %s52, %s53
      %p62 = scmp.eq.s32.totalorder %s21, 0
      %p63 = por %p61, %p62
      %p64 = scmp.ne.s32.totalorder %s52, %s53
      %p65 = scmp.eq.s32.totalorder %s22, 1
      %p66 = por %p64, %p65
      %p68 = scmp.ne.s32.totalorder %s53, %s67
      %p69 = scmp.eq.s32.totalorder %s22, 0
      %p70 = por %p68, %p69
      %s72 = sadd.s32 %s71, 1
      %p75 = scmp.eq.s32.totalorder %s16, 1
      %p76 = scmp.ne.s32.totalorder %s71, %s73
      %p77 = scmp.eq.s32.totalorder %s16, 0
      %p78 = por %p76, %p77
      %p79 = scmp.ne.s32.totalorder %s71, %s73
      %p80 = scmp.eq.s32.totalorder %s21, 1
      %p81 = por %p79, %p80
      %p82 = scmp.ne.s32.totalorder %s73, %s74
      %p83 = scmp.eq.s32.totalorder %s21, 0
      %p84 = por %p82, %p83
      %p85 = scmp.ne.s32.totalorder %s73, %s74
      %p86 = scmp.eq.s32.totalorder %s22, 1
      %p87 = por %p85, %p86
      %p89 = scmp.ne.s32.totalorder %s74, %s88
      %p90 = scmp.eq.s32.totalorder %s22, 0
      %p91 = por %p89, %p90
      %s92 = ssub.s32 %s16, %s23
      %p93 = scmp.eq.s32.totalorder %s92, 0
      %s95 = sadd.s32 %s94, 1
      %s96 = scalar_select %p93, %s94, %s95
      %p99 = pneg %p93
      %p100 = scmp.eq.s32.totalorder %s16, 1
      %p101 = por %p99, %p100
      %p102 = scmp.ne.s32.totalorder %s94, %s97
      %p103 = scmp.eq.s32.totalorder %s16, 0
      %p104 = por %p102, %p103
      %p105 = scmp.ne.s32.totalorder %s94, %s97
      %p106 = scmp.eq.s32.totalorder %s21, 1
      %p107 = por %p105, %p106
      %p108 = scmp.ne.s32.totalorder %s97, %s98
      %p109 = scmp.eq.s32.totalorder %s21, 0
      %p110 = por %p108, %p109
      %p111 = scmp.ne.s32.totalorder %s97, %s98
      %p112 = scmp.eq.s32.totalorder %s22, 1
      %p113 = por %p111, %p112
      %p115 = scmp.ne.s32.totalorder %s98, %s114
      %p116 = scmp.eq.s32.totalorder %s22, 0
      %p117 = por %p115, %p116
      %p118 = scmp.le.s32.totalorder 1, %s16
      %p119 = scmp.lt.s32.totalorder %s16, 3
      %p120 = pnand %p118, %p119
      %p121 = pneg %p120
      // Predicated region
      $region9: #{mlp_mixer_forward.12} parent=5 // pred_check
        _
      $region10: #{mlp_mixer_forward.12} parent=5 // pred_check_branch
        %123 = sbr.rel (%p120) target = $region12
      $region11: #{mlp_mixer_forward.12} parent=5 // pred_region
        %s124 = ssub.s32 %s16, 1
        // Predicated region
        $region13: #{mlp_mixer_forward.12} parent=11 // pred_check
          %p125 = pneg %p63
        $region14: #{mlp_mixer_forward.12} parent=11 // pred_check_branch
          %127 = sbr.rel (%p125) target = $region16
        $region15: #{mlp_mixer_forward.12} parent=11 // pred_region
          %s129 = ssub.s32 16, 16
          %130 = vsyncadd [#allocation6], %s129
          %s132 = sshll.u32 [#allocation5], 4
          %s133 = int_to_ptr.vmem [resolvable:$true] %s132
          %135 = dma.hbm_to_vmem [thread:$0]  %s1, 16, %s133, [#allocation6]
        $region16: #{mlp_mixer_forward.12} parent=11 // pred_fallthru
          _
        // Predicated region
        $region17: #{mlp_mixer_forward.12} parent=11 // pred_check
          %p136 = pneg %p84
        $region18: #{mlp_mixer_forward.12} parent=11 // pred_check_branch
          %138 = sbr.rel (%p136) target = $region20
        $region19: #{mlp_mixer_forward.12} parent=11 // pred_region
          %s140 = ssub.s32 16, 16
          %141 = vsyncadd [#allocation6], %s140
          %s143 = sshll.u32 [#allocation7], 4
          %s144 = int_to_ptr.vmem [resolvable:$true] %s143
          %146 = dma.hbm_to_vmem [thread:$0]  %s2, 16, %s144, [#allocation6]
        $region20: #{mlp_mixer_forward.12} parent=11 // pred_fallthru
          _
      $region12: #{mlp_mixer_forward.12} parent=5 // pred_fallthru
        _
      %p147 = scmp.lt.s32.totalorder %s16, 2
      // Predicated region
      $region21: #{mlp_mixer_forward.12} parent=5 // pred_check
        %p148 = pneg %p147
      $region22: #{mlp_mixer_forward.12} parent=5 // pred_check_branch
        %150 = sbr.rel (%p148) target = $region24
      $region23: #{mlp_mixer_forward.12} parent=5 // pred_region
        // Predicated region
        $region25: #{mlp_mixer_forward.12} parent=23 // pred_check
          %p151 = pneg %p36
        $region26: #{mlp_mixer_forward.12} parent=23 // pred_check_branch
          %153 = sbr.rel (%p151) target = $region28
        $region27: #{mlp_mixer_forward.12} parent=23 // pred_region
          %s154 = sand.u32 %s26, 1
          %s155 = scalar_lea.sflag [#allocation3], %s154
          %s156 = sand.u32 %s26, 1
          %s157 = smul.addr %s156, 16
          %s158 = scalar_lea.vmem [#allocation2], %s157
          %s160 = ssub.s32 256, 256
          %161 = vsyncadd %s155, %s160
          %s162 = smul.addr %s16, 2
          %s163 = smul.addr %s162, 128
          %s164 = scalar_lea.hbm %s0, %s163
          %s165 = sshll.u32 %s158, 4
          %s166 = int_to_ptr.vmem [resolvable:$true] %s165
          %171 = dma.hbm_to_vmem [thread:$0]  %s164, 256, %s166, %s155, 128, 128, 8
        $region28: #{mlp_mixer_forward.12} parent=23 // pred_fallthru
          _
      $region24: #{mlp_mixer_forward.12} parent=5 // pred_fallthru
        _
      %p172 = scmp.le.s32.totalorder 1, %s16
      %p173 = scmp.lt.s32.totalorder %s16, 3
      %p174 = pnand %p172, %p173
      %p175 = pneg %p174
      // Predicated region
      $region29: #{mlp_mixer_forward.12} parent=5 // pred_check
        _
      $region30: #{mlp_mixer_forward.12} parent=5 // pred_check_branch
        %177 = sbr.rel (%p174) target = $region32
      $region31: #{mlp_mixer_forward.12} parent=5 // pred_region
        %s178 = ssub.s32 %s16, 1
        %s179 = sand.u32 %s29, 1
        %s180 = scalar_lea.sflag [#allocation3], %s179
        %s181 = sand.u32 %s29, 1
        %s182 = smul.addr %s181, 16
        %s183 = scalar_lea.vmem [#allocation2], %s182
        // Predicated region
        $region33: #{mlp_mixer_forward.12} parent=31 // pred_check
          %p184 = pneg %p42
        $region34: #{mlp_mixer_forward.12} parent=31 // pred_check_branch
          %186 = sbr.rel (%p184) target = $region36
        $region35: #{mlp_mixer_forward.12} parent=31 // pred_region
          %187 = dma.done %s180, 256
        $region36: #{mlp_mixer_forward.12} parent=31 // pred_fallthru
          _
        // Predicated region
        $region37: #{mlp_mixer_forward.12} parent=31 // pred_check
          %p188 = pneg %p63
        $region38: #{mlp_mixer_forward.12} parent=31 // pred_check_branch
          %190 = sbr.rel (%p188) target = $region40
        $region39: #{mlp_mixer_forward.12} parent=31 // pred_region
          %191 = dma.done [#allocation6], 16
        $region40: #{mlp_mixer_forward.12} parent=31 // pred_fallthru
          _
        // Predicated region
        $region41: #{mlp_mixer_forward.12} parent=31 // pred_check
          %p192 = pneg %p84
        $region42: #{mlp_mixer_forward.12} parent=31 // pred_check_branch
          %194 = sbr.rel (%p192) target = $region44
        $region43: #{mlp_mixer_forward.12} parent=31 // pred_region
          %195 = dma.done [#allocation6], 16
        $region44: #{mlp_mixer_forward.12} parent=31 // pred_fallthru
          _
        %s196 = sand.u32 %s29, 1
        %s197 = scalar_lea.sflag [#allocation3], %s196
        %s198 = sand.u32 %s29, 1
        %s199 = smul.addr %s198, 16
        %s200 = scalar_lea.vmem [#allocation2], %s199
        %p201 = pneg %p42
        %p202 = pneg %p39
        %p203 = pneg %p63
        %p204 = pneg %p60
        %p205 = pneg %p84
        %p206 = pneg %p81
        %p207 = pneg %p110
        %p208 = pneg %p107
        %s209 = sand.u32 %s97, 1
        %s210 = scalar_lea.sflag [#allocation4], %s209
        %s211 = sand.u32 %s97, 1
        %s212 = scalar_lea.vmem [#allocation8], %s211
        %v213 = vld [vmem:[%s183] sm:$0xff]
        %v214 = vld [vmem:[%s183 + $0x8] sm:$0xff]
        %vm215 = vcmask 261120
        %v216 = vsel %vm215, %v213, 0.0
        %217 = vadd.xlane.f32.xlu0 %v216
        %v218 = vpop.xlane.xlu0 %217
        %v219 = vsel %vm215, %v214, 0.0
        %220 = vadd.xlane.f32.xlu0 %v219
        %v221 = vpop.xlane.xlu0 %220
        %v222 = vrcp.pop 32.0
        %v223 = vmul.f32 %v218, %v222
        %v224 = vmul.f32 %v221, %v222
        %v225 = vsub.f32 %v213, %v223
        %v226 = vsub.f32 %v214, %v224
        %v227 = vmul.f32 %v225, %v225
        %v228 = vmul.f32 %v226, %v226
        %v229 = vsel %vm215, %v227, 0.0
        %230 = vadd.xlane.f32.xlu0 %v229
        %v231 = vpop.xlane.xlu0 %230
        %v232 = vsel %vm215, %v228, 0.0
        %233 = vadd.xlane.f32.xlu0 %v232
        %v234 = vpop.xlane.xlu0 %233
        %v235 = vmul.f32 %v231, %v222
        %v236 = vmul.f32 %v234, %v222
        %v237 = vadd.f32 %v235, 1e-05
        %v238 = vadd.f32 %v236, 1e-05
        %v239 = vrsqrt.pop %v237
        %v240 = vrsqrt.pop %v238
        %v241 = vmul.f32 %v225, %v239
        %v242 = vmul.f32 %v226, %v240
        %v243 = vld [vmem:[#allocation5] sm:$0x1]
        %v245 = vlaneseq
        %v246 = vshrl.u32 %v245, 7
        %v247 = vsub.s32 0, %v246
        %v248 = vrot.slane %v243, %v247
        %v250 = vmul.f32 %v241, %v248
        %v251 = vmul.f32 %v242, %v248
        %v252 = vld [vmem:[#allocation7] sm:$0x1]
        %v254 = vlaneseq
        %v255 = vshrl.u32 %v254, 7
        %v256 = vsub.s32 0, %v255
        %v257 = vrot.slane %v252, %v256
        %v259 = vadd.f32 %v250, %v257
        %v260 = vadd.f32 %v251, %v257
        %v261 = vsel %vm215, %v259, 0.0
        %v262 = vsel %vm215, %v260, 0.0
        %v263 = vadd.f32 %v261, %v262
        %v264 = vrot.slane %v263, 4
        %v265 = vadd.f32 %v263, %v264
        %v266 = vrot.slane %v265, 2
        %v267 = vadd.f32 %v265, %v266
        %v268 = vrot.slane %v267, 1
        %v269 = vadd.f32 %v267, %v268
        %v270 = vrcp.pop 16.0
        %v271 = vmul.f32 %v269, %v270
        %vm272 = vcmask 253952
        %273 = vst.msk [vmem:[%s212] sm:$0x1] %vm272, %v271
        %s274 = sand.u32 %s97, 1
        %s275 = scalar_lea.sflag [#allocation4], %s274
        %s276 = sand.u32 %s97, 1
        %s277 = scalar_lea.vmem [#allocation8], %s276
        // Predicated region
        $region45: #{mlp_mixer_forward.12} parent=31 // pred_check
          %p278 = pneg %p107
        $region46: #{mlp_mixer_forward.12} parent=31 // pred_check_branch
          %280 = sbr.rel (%p278) target = $region48
        $region47: #{mlp_mixer_forward.12} parent=31 // pred_region
          %s282 = ssub.s32 16, 16
          %283 = vsyncadd %s275, %s282
          %s284 = smul.addr %s21, 16
          %s285 = scalar_lea.hbm %s3, %s284
          %s287 = sshll.u32 %s277, 4
          %s288 = int_to_ptr.vmem [resolvable:$true] %s287
          %290 = dma.vmem_to_hbm [thread:$0]  %s288, 16, %s285, %s275
        $region48: #{mlp_mixer_forward.12} parent=31 // pred_fallthru
          _
      $region32: #{mlp_mixer_forward.12} parent=5 // pred_fallthru
        _
      %p291 = scmp.le.s32.totalorder 2, %s16
      // Predicated region
      $region49: #{mlp_mixer_forward.12} parent=5 // pred_check
        %p292 = pneg %p291
      $region50: #{mlp_mixer_forward.12} parent=5 // pred_check_branch
        %294 = sbr.rel (%p292) target = $region52
      $region51: #{mlp_mixer_forward.12} parent=5 // pred_region
        %s295 = ssub.s32 %s16, 2
        // Predicated region
        $region53: #{mlp_mixer_forward.12} parent=51 // pred_check
          %p296 = pneg %p113
        $region54: #{mlp_mixer_forward.12} parent=51 // pred_check_branch
          %298 = sbr.rel (%p296) target = $region56
        $region55: #{mlp_mixer_forward.12} parent=51 // pred_region
          %s299 = sand.u32 %s98, 1
          %s300 = scalar_lea.sflag [#allocation4], %s299
          %s301 = sand.u32 %s98, 1
          %s302 = scalar_lea.vmem [#allocation8], %s301
          %303 = dma.done %s300, 16
        $region56: #{mlp_mixer_forward.12} parent=51 // pred_fallthru
          _
      $region52: #{mlp_mixer_forward.12} parent=5 // pred_fallthru
        _
    $region6: #{mlp_mixer_forward.12} parent=1 // loop_footer
      %s20 = sadd.s32 1, %s16
    $region7: #{mlp_mixer_forward.12} parent=1 // loop_footer_branch
      %15 = sbr.rel target = $region3
    $region8: #{mlp_mixer_forward.12} parent=1 // loop_exit
      _
    %304 = vsyncpa [#allocation3], 1
    %s305 = scalar_lea.sflag [#allocation3], 1
    %306 = vsyncpa %s305, 1
    %307 = vsyncpa [#allocation6], 1
    %308 = vsyncpa [#allocation4], 1
    %s309 = scalar_lea.sflag [#allocation4], 1
    %310 = vsyncpa %s309, 1

// kernel: mlp_mixer_forward.13
$region0: #{mlp_mixer_forward.13}
  #allocation0 [shape = 'u32[]', space=smem, size = 0x4, offset = 0x4, fixed_abs, tag = 'smem constant byte address 0x4 - core index']
  #allocation1 [shape = 'u32[144,128]{1,0:T(1,128)}', space=vmem, size = 0x12000, scoped, tag = 'internal scratch']
  %s0 = inlined_call_operand.hbm [shape: f32[8,128], index: 0, kind: input, shape index: {}]
  %s1 = inlined_call_operand.hbm [shape: f32[128,128], index: 1, kind: input, shape index: {}]
  %s2 = inlined_call_operand.hbm [shape: f32[1,128], index: 2, kind: input, shape index: {}]
  %s3 = inlined_call_operand.hbm [shape: f32[8,128], index: 3, kind: output, shape index: {}]
  %s4 = sld [smem:[#allocation0]]
  $region34: #{mlp_mixer_forward.13} parent=0
    _
  %s6 = ssub.s32 1, %s4
  %s7 = scalar_select 0, %s6, %s4
  $region1: #{mlp_mixer_forward.13} parent=0
    #allocation2 [shape = 'u8[4096]{0}', space=vmem, size = 0x1000, scoped, tag = 'input window, operand 0, single buffered']
    #allocation3 [shape = 's32[1]{0}', space=sflag, size = 0x4, scoped, tag = 'scoped memory for mlp_mixer_forward.13']
    #allocation4 [shape = 's32[1]{0}', space=sflag, size = 0x4, scoped, tag = 'scoped memory for mlp_mixer_forward.13']
    #allocation5 [shape = 'u8[65536]{0}', space=vmem, size = 0x10000, scoped, tag = 'input window, operand 1, single buffered']
    #allocation6 [shape = 's32[1]{0}', space=sflag, size = 0x4, scoped, tag = 'scoped memory for mlp_mixer_forward.13']
    #allocation7 [shape = 'u8[512]{0}', space=vmem, size = 0x400, scoped, tag = 'input window, operand 2, single buffered']
    #allocation8 [shape = 'u8[4096]{0}', space=vmem, size = 0x1000, scoped, tag = 'output window, operand 0, single buffered']
    %8 = vsyncpa [#allocation3], 0
    %9 = vsyncpa [#allocation6], 0
    %10 = vsyncpa [#allocation4], 0
    // Predicated region
    $region2: #{mlp_mixer_forward.13} parent=1 // pred_check
      _
    $region3: #{mlp_mixer_forward.13} parent=1 // pred_check_branch
      %12 = sbr.rel (0) target = $region5
    $region4: #{mlp_mixer_forward.13} parent=1 // pred_region
      %s14 = ssub.s32 128, 128
      %15 = vsyncadd [#allocation3], %s14
      %s17 = sshll.u32 [#allocation2], 4
      %s18 = int_to_ptr.vmem [resolvable:$true] %s17
      %20 = dma.hbm_to_vmem [thread:$0]  %s0, 128, %s18, [#allocation3]
    $region5: #{mlp_mixer_forward.13} parent=1 // pred_fallthru
      _
    // Predicated region
    $region6: #{mlp_mixer_forward.13} parent=1 // pred_check
      _
    $region7: #{mlp_mixer_forward.13} parent=1 // pred_check_branch
      %22 = sbr.rel (0) target = $region9
    $region8: #{mlp_mixer_forward.13} parent=1 // pred_region
      %s24 = ssub.s32 2048, 2048
      %25 = vsyncadd [#allocation6], %s24
      %s26 = sshll.u32 [#allocation5], 4
      %s27 = int_to_ptr.vmem [resolvable:$true] %s26
      %32 = dma.hbm_to_vmem [thread:$0]  %s1, 2048, %s27, [#allocation6], 128, 128, 8
    $region9: #{mlp_mixer_forward.13} parent=1 // pred_fallthru
      _
    // Predicated region
    $region10: #{mlp_mixer_forward.13} parent=1 // pred_check
      _
    $region11: #{mlp_mixer_forward.13} parent=1 // pred_check_branch
      %34 = sbr.rel (0) target = $region13
    $region12: #{mlp_mixer_forward.13} parent=1 // pred_region
      %s36 = ssub.s32 16, 16
      %37 = vsyncadd [#allocation6], %s36
      %s39 = sshll.u32 [#allocation7], 4
      %s40 = int_to_ptr.vmem [resolvable:$true] %s39
      %42 = dma.hbm_to_vmem [thread:$0]  %s2, 16, %s40, [#allocation6]
    $region13: #{mlp_mixer_forward.13} parent=1 // pred_fallthru
      _
    // Predicated region
    $region14: #{mlp_mixer_forward.13} parent=1 // pred_check
      _
    $region15: #{mlp_mixer_forward.13} parent=1 // pred_check_branch
      %44 = sbr.rel (0) target = $region17
    $region16: #{mlp_mixer_forward.13} parent=1 // pred_region
      %45 = dma.done [#allocation3], 128
    $region17: #{mlp_mixer_forward.13} parent=1 // pred_fallthru
      _
    // Predicated region
    $region18: #{mlp_mixer_forward.13} parent=1 // pred_check
      _
    $region19: #{mlp_mixer_forward.13} parent=1 // pred_check_branch
      %47 = sbr.rel (0) target = $region21
    $region20: #{mlp_mixer_forward.13} parent=1 // pred_region
      %48 = dma.done [#allocation6], 2048
    $region21: #{mlp_mixer_forward.13} parent=1 // pred_fallthru
      _
    // Predicated region
    $region22: #{mlp_mixer_forward.13} parent=1 // pred_check
      _
    $region23: #{mlp_mixer_forward.13} parent=1 // pred_check_branch
      %50 = sbr.rel (0) target = $region25
    $region24: #{mlp_mixer_forward.13} parent=1 // pred_region
      %51 = dma.done [#allocation6], 16
    $region25: #{mlp_mixer_forward.13} parent=1 // pred_fallthru
      _
    %v52 = vld [vmem:[#allocation2] sm:$0xff]
    %v53 = vld [vmem:[#allocation5] sm:$0xff]
    %v54 = vld [vmem:[#allocation5 + $0x8] sm:$0xff]
    %v55 = vld [vmem:[#allocation5 + $0x10] sm:$0xff]
    %v56 = vld [vmem:[#allocation5 + $0x18] sm:$0xff]
    %v57 = vld [vmem:[#allocation5 + $0x20] sm:$0xff]
    %v58 = vld [vmem:[#allocation5 + $0x28] sm:$0xff]
    %v59 = vld [vmem:[#allocation5 + $0x30] sm:$0xff]
    %v60 = vld [vmem:[#allocation5 + $0x38] sm:$0xff]
    %v61 = vld [vmem:[#allocation5 + $0x40] sm:$0xff]
    %v62 = vld [vmem:[#allocation5 + $0x48] sm:$0xff]
    %v63 = vld [vmem:[#allocation5 + $0x50] sm:$0xff]
    %v64 = vld [vmem:[#allocation5 + $0x58] sm:$0xff]
    %v65 = vld [vmem:[#allocation5 + $0x60] sm:$0xff]
    %v66 = vld [vmem:[#allocation5 + $0x68] sm:$0xff]
    %v67 = vld [vmem:[#allocation5 + $0x70] sm:$0xff]
    %v68 = vld [vmem:[#allocation5 + $0x78] sm:$0xff]
    %v69 = vld [vmem:[#allocation7] sm:$0x1]
    %v71 = vlaneseq
    %v72 = vshrl.u32 %v71, 7
    %v73 = vsub.s32 0, %v72
    %v74 = vrot.slane %v69, %v73
    %76 = vmatprep.subr.mxu0 0.0
    %77 = vmatpush1.msra.mxu0 %v53
    %78 = vmatprep.subr.mxu0 0.0
    %79 = vmatpush1.msra.mxu0 %v54
    %80 = vmatprep.subr.mxu0 0.0
    %81 = vmatpush1.msra.mxu0 %v55
    %82 = vmatprep.subr.mxu0 0.0
    %83 = vmatpush1.msra.mxu0 %v56
    %84 = vmatprep.subr.mxu0 0.0
    %85 = vmatpush1.msra.mxu0 %v57
    %86 = vmatprep.subr.mxu0 0.0
    %87 = vmatpush1.msra.mxu0 %v58
    %88 = vmatprep.subr.mxu0 0.0
    %89 = vmatpush1.msra.mxu0 %v59
    %90 = vmatprep.subr.mxu0 0.0
    %91 = vmatpush1.msra.mxu0 %v60
    %92 = vmatprep.subr.mxu0 0.0
    %93 = vmatpush1.msra.mxu0 %v61
    %94 = vmatprep.subr.mxu0 0.0
    %95 = vmatpush1.msra.mxu0 %v62
    %96 = vmatprep.subr.mxu0 0.0
    %97 = vmatpush1.msra.mxu0 %v63
    %98 = vmatprep.subr.mxu0 0.0
    %99 = vmatpush1.msra.mxu0 %v64
    %100 = vmatprep.subr.mxu0 0.0
    %101 = vmatpush1.msra.mxu0 %v65
    %102 = vmatprep.subr.mxu0 0.0
    %103 = vmatpush1.msra.mxu0 %v66
    %104 = vmatprep.subr.mxu0 0.0
    %105 = vmatpush1.msra.mxu0 %v67
    %106 = vmatprep.subr.mxu0 0.0
    %107 = vmatpush1.msra.mxu0 %v68
    %108 = vmatprep.subr.mxu0 0.0
    %109 = vmatpush1.msra.mxu0 0.0
    %110 = vmatprep.subr.mxu0 0.0
    %111 = vmatpush1.msra.mxu0 0.0
    %112 = vmatprep.subr.mxu0 0.0
    %113 = vmatpush1.msra.mxu0 0.0
    %114 = vmatprep.subr.mxu0 0.0
    %115 = vmatpush1.msra.mxu0 0.0
    %116 = vmatprep.subr.mxu0 0.0
    %117 = vmatpush1.msra.mxu0 0.0
    %118 = vmatprep.subr.mxu0 0.0
    %119 = vmatpush1.msra.mxu0 0.0
    %120 = vmatprep.subr.mxu0 0.0
    %121 = vmatpush1.msra.mxu0 0.0
    %122 = vmatprep.subr.mxu0 0.0
    %123 = vmatpush1.msra.mxu0 0.0
    %124 = vmatprep.subr.mxu0 0.0
    %125 = vmatpush1.msra.mxu0 0.0
    %126 = vmatprep.subr.mxu0 0.0
    %127 = vmatpush1.msra.mxu0 0.0
    %128 = vmatprep.subr.mxu0 0.0
    %129 = vmatpush1.msra.mxu0 0.0
    %130 = vmatprep.subr.mxu0 0.0
    %131 = vmatpush1.msra.mxu0 0.0
    %132 = vmatprep.subr.mxu0 0.0
    %133 = vmatpush1.msra.mxu0 0.0
    %134 = vmatprep.subr.mxu0 0.0
    %135 = vmatpush1.msra.mxu0 0.0
    %136 = vmatprep.subr.mxu0 0.0
    %137 = vmatpush1.msra.mxu0 0.0
    %138 = vmatprep.subr.mxu0 0.0
    %139 = vmatpush1.msra.mxu0 0.0
    %140 = vmatprep.mubr.f32.mxu0 0.0
    %141 = vmatmul.mubr.f32.gmra.mrb[0].mxu0 %v52
    %v142 = vpop.f32.mrb[0].mxu0
    %v143 = vadd.f32 %v74, %v142
    %v144 = vpop.f32.mrb[0].mxu0
    %145 = vdwg.mxu0
    %146 = vst [vmem:[#allocation8] sm:$0xff] %v143
    // Predicated region
    $region26: #{mlp_mixer_forward.13} parent=1 // pred_check
      _
    $region27: #{mlp_mixer_forward.13} parent=1 // pred_check_branch
      %148 = sbr.rel (0) target = $region29
    $region28: #{mlp_mixer_forward.13} parent=1 // pred_region
      %s150 = ssub.s32 128, 128
      %151 = vsyncadd [#allocation4], %s150
      %s153 = sshll.u32 [#allocation8], 4
      %s154 = int_to_ptr.vmem [resolvable:$true] %s153
      %156 = dma.vmem_to_hbm [thread:$0]  %s154, 128, %s3, [#allocation4]
    $region29: #{mlp_mixer_forward.13} parent=1 // pred_fallthru
      _
    // Predicated region
    $region30: #{mlp_mixer_forward.13} parent=1 // pred_check
      _
    $region31: #{mlp_mixer_forward.13} parent=1 // pred_check_branch
      %158 = sbr.rel (0) target = $region33
    $region32: #{mlp_mixer_forward.13} parent=1 // pred_region
      %159 = dma.done [#allocation4], 128
    $region33: #{mlp_mixer_forward.13} parent=1 // pred_fallthru
      _
    %160 = vsyncpa [#allocation3], 1
    %161 = vsyncpa [#allocation6], 1
    %162 = vsyncpa [#allocation4], 1

</llo_original>
